<compile_context>
chip_gen: v6e
topology: v6e:2x2x1
jax: 0.10.0
libtpu: 0.0.40
codegen_flags: <defaults>
</compile_context>

<pallas_src>
import functools

import jax
import jax.numpy as jnp
import numpy as np
from jax.experimental import pallas as pl
from jax.experimental.pallas import tpu as pltpu

NEG_SLOPE = 0.01  # PyTorch F.leaky_relu default


def ksize(size):
    return max(2, round(size / 9))


def _leaky(x):
    return jnp.where(x > 0, x, NEG_SLOPE * x)


def _lane_tile(a, reps):
    """Replicate `a` (rows, S) `reps` times along lanes via log2 concat doubling."""
    if reps <= 1:
        return a
    out = a
    built = 1
    while built * 2 <= reps:
        out = jnp.concatenate([out, out], axis=-1)
        built *= 2
    if built < reps:
        out = jnp.concatenate([out] + [a] * (reps - built), axis=-1)
    return out


# ----------------------------- Pallas kernel --------------------------------
def _formhead_kernel(xs_ref, wcl_ref, bcl_ref, wfc_ref, bfc_ref, out_ref,
                     fcin_ref, *, NG, G, kh, kw, S, R):
    """One batch block of MB rows.

    xs_ref  : (1, R, MB, S)    f32  base slabs; slab r*(kw+1)+c = x[b, r+2i, c+2j]
    wcl_ref : (NG, K, 1, G*S)  f32  per-lane conv weights (lane g*S+s -> w[q*G+g, k])
    bcl_ref : (NG, 1, G*S)     f32  per-lane conv bias
    wfc_ref : (Cp*S, Op)       bf16 fc weight (transposed, padded)
    bfc_ref : (1, Op)          f32  fc bias (padded)
    out_ref : (MB, Op)         f32
    fcin_ref: (MB, Cp*S)       bf16 scratch: pooled activations, torch.flatten order
    """
    GS = G * S
    # Lane-replicate every base slab once per grid step (hoisted out of the
    # channel-group loop; reused by all taps / pool offsets / groups).
    reps = [_lane_tile(xs_ref[0, r], G) for r in range(R)]   # each (MB, G*S) f32

    for q in range(NG):                          # G channels per 128-lane group
        pooled = None
        for oy in range(2):                      # MaxPool2d(2, 2) offsets
            for ox in range(2):
                acc = None
                for di in range(kh):             # conv taps (VPU, full lane width)
                    for dj in range(kw):
                        k = di * kw + dj
                        r = (oy + di) * (kw + 1) + (ox + dj)
                        term = reps[r] * wcl_ref[q, k]
                        acc = term if acc is None else acc + term
                a = _leaky(acc + bcl_ref[q])     # conv + bias + leaky_relu (f32)
                pooled = a if pooled is None else jnp.maximum(pooled, a)
        # One unmasked lane-dense 128-wide store per channel group; bf16 cast
        # only at this boundary (keep elementwise math f32 for the v5e VPU).
        fcin_ref[:, q * GS:(q + 1) * GS] = pooled.astype(fcin_ref.dtype)

    # fc + leaky_relu: single MXU matmul, bf16 inputs, f32 accumulation.
    z = jnp.dot(fcin_ref[...], wfc_ref[...],
                preferred_element_type=jnp.float32) + bfc_ref[...]
    out_ref[...] = _leaky(z)


# ----------------------------- wrapper (glue) --------------------------------
def _pick_mb(batch, cap=256):
    """Batch rows per grid step: as large as the batch allows (fills vreg
    sublanes / MXU M), capped at 256, keeping >=2 grid blocks when possible so
    a 'parallel' batch axis can shard across v7x's two TensorCores."""
    rows = ((batch + 7) // 8) * 8
    if rows >= 2 * cap:
        return cap
    half = ((rows + 15) // 16) * 8          # ~ceil(rows/2), rounded to a sublane group
    return max(8, min(cap, half))


def _padded_vmem_bytes(shape, dtype):
    """Rough VMEM footprint of one buffer incl. (8,128) tile padding."""
    itemsize = jnp.dtype(dtype).itemsize
    lane = -(-shape[-1] // 128) * 128
    sub = -(-shape[-2] // 8) * 8
    lead = 1
    for d in shape[:-2]:
        lead *= d
    return lead * sub * lane * itemsize


def formhead_forward(x, conv_w, conv_b, fc_w, fc_b):
    """x: (B, 1, H, W) float32 (NCHW, like the PyTorch module). Returns (B, csize)."""
    B, cin, H, W = x.shape
    assert cin == 1
    C, _, kh, kw = conv_w.shape
    O = fc_w.shape[0]
    Ho, Wo = H - kh + 1, W - kw + 1
    Hp, Wp = Ho // 2, Wo // 2
    S, K = Hp * Wp, kh * kw
    assert fc_w.shape[1] == C * S, "fc input dim must match pooled feature count"

    MB = _pick_mb(B)                         # batch rows per grid step
    Bp = -(-B // MB) * MB
    nb = Bp // MB

    G = max(1, 128 // S)                     # channels per lane group (dense when S | 128)
    NG = -(-C // G)
    Cp = NG * G
    GS = G * S
    F = Cp * S                               # fcin width (>= C*S; extra cols hit zero fc rows)
    Op = ((O + 127) // 128) * 128            # lane-dense fc output, sliced back below
    R = (kh + 1) * (kw + 1)                  # distinct (tap + pool-offset) base slabs

    # Base slabs: slab (r, c) holds x[b, r + 2i, c + 2j] for i < Hp, j < Wp.
    # Tap (di, dj) at pool offset (oy, ox) reads slab (oy + di, ox + dj), so we
    # never materialize the 16 redundant per-(tap, offset) views.
    # TODO(synk): the remaining ~1.8x input duplication could be removed by
    # DMAing raw (MB, H, W) blocks and gathering the strided views in-kernel,
    # but sub-128-lane multi-axis strided reshapes lower fragilely on Mosaic.
    x2d = x[:, 0].astype(jnp.float32)
    slabs = []
    for r in range(kh + 1):
        for c in range(kw + 1):
            sl = x2d[:, r:r + 2 * Hp:2, c:c + 2 * Wp:2].reshape(B, S)
            slabs.append(sl)
    xs = jnp.stack(slabs, axis=1)                          # (B, R, S)
    xs = jnp.pad(xs, ((0, Bp - B), (0, 0), (0, 0)))        # padded rows -> garbage, sliced off
    xs = xs.reshape(nb, MB, R, S).transpose(0, 2, 1, 3)    # (nb, R, MB, S)

    # Per-lane conv weight / bias vectors: lane g*S + s of group q carries
    # conv_w[q*G + g, k] / conv_b[q*G + g] (zero for padded channels).
    wc = jnp.pad(conv_w.reshape(C, K).astype(jnp.float32), ((0, Cp - C), (0, 0)))
    wcl = jnp.repeat(wc.reshape(NG, G, K).transpose(0, 2, 1), S, axis=2)
    wcl = wcl.reshape(NG, K, 1, GS)                        # (NG, K, 1, G*S)
    bcl = jnp.repeat(jnp.pad(conv_b.astype(jnp.float32), (0, Cp - C)).reshape(NG, G),
                     S, axis=1).reshape(NG, 1, GS)         # (NG, 1, G*S)

    # fcin columns come out in torch.flatten order (c*S + s), so the "fold the
    # flatten permutation into fc_w" step is the identity here: wfc = fc_w.T.
    wfc = jnp.zeros((F, Op), jnp.bfloat16).at[:C * S, :O].set(fc_w.T.astype(jnp.bfloat16))
    bfc = jnp.zeros((1, Op), jnp.float32).at[:, :O].set(fc_b.astype(jnp.float32)[None, :])

    est = (2 * _padded_vmem_bytes((1, R, MB, S), jnp.float32)      # xs block (2x buffered)
           + 2 * _padded_vmem_bytes((NG, K, 1, GS), jnp.float32)   # conv weight vectors
           + 2 * _padded_vmem_bytes((NG, 1, GS), jnp.float32)      # conv bias vectors
           + 2 * _padded_vmem_bytes((F, Op), jnp.bfloat16)         # resident fc weight
           + 2 * _padded_vmem_bytes((1, Op), jnp.float32)          # fc bias
           + 2 * _padded_vmem_bytes((MB, Op), jnp.float32)         # out block
           + _padded_vmem_bytes((MB, F), jnp.bfloat16))            # fcin scratch
    vmem_limit = int(min(64 << 20, max(8 << 20, 2 * est + (2 << 20))))
    # NOTE: if C*S ever grows, additionally single-buffer the resident wfc/bfc
    # specs (pipeline_mode=pl.Buffered(1)) to stay inside v7x's 64 MiB VMEM.

    kernel = functools.partial(_formhead_kernel, NG=NG, G=G, kh=kh, kw=kw, S=S, R=R)

    out = pl.pallas_call(
        kernel,
        out_shape=jax.ShapeDtypeStruct((Bp, Op), jnp.float32),
        grid=(nb,),
        in_specs=[
            pl.BlockSpec((1, R, MB, S), lambda i: (i, 0, 0, 0)),     # base slabs (per block)
            pl.BlockSpec((NG, K, 1, GS), lambda i: (0, 0, 0, 0)),    # conv weights (resident)
            pl.BlockSpec((NG, 1, GS), lambda i: (0, 0, 0)),          # conv bias   (resident)
            pl.BlockSpec((F, Op), lambda i: (0, 0)),                 # fc weight   (resident)
            pl.BlockSpec((1, Op), lambda i: (0, 0)),                 # fc bias     (resident)
        ],
        out_specs=pl.BlockSpec((MB, Op), lambda i: (i, 0)),
        scratch_shapes=[pltpu.VMEM((MB, F), jnp.bfloat16)],
        compiler_params=pltpu.CompilerParams(
            dimension_semantics=("parallel",),
            vmem_limit_bytes=vmem_limit),
    )(xs, wcl, bcl, wfc, bfc)
    # NOTE: this slice costs one extra HBM pass; consumers that tolerate the
    # (Bp, Op) padding could take `out` directly.
    return out[:B, :O]


# --------------------------- plain-JAX reference -----------------------------
def ref_forward(x, conv_w, conv_b, fc_w, fc_b):
    y = jax.lax.conv_general_dilated(
        x, conv_w, window_strides=(1, 1), padding='VALID',
        dimension_numbers=('NCHW', 'OIHW', 'NCHW'))
    y = y + conv_b[None, :, None, None]
    y = jnp.where(y > 0, y, NEG_SLOPE * y)
    y = jax.lax.reduce_window(y, -jnp.inf, jax.lax.max,
                              (1, 1, 2, 2), (1, 1, 2, 2), 'VALID')
    y = y.reshape(x.shape[0], -1)               # (B, C*Hp*Wp), torch.flatten order
    z = y @ fc_w.T + fc_b
    return jnp.where(z > 0, z, NEG_SLOPE * z)


# --------------------------------- main --------------------------------------
if __name__ == "__main__":
    # Shapes consistent with the module: size/feature_len such that the
    # csize*(size//2)*(feature_len//2) fc dim matches the conv+pool output.
    # batch=24 exercises batch padding and >=2 grid blocks.
    size, feature_len, csize, batch = 9, 9, 16, 24
    kh, kw = ksize(size), ksize(feature_len)          # both = 2

    key = jax.random.PRNGKey(0)
    k1, k2, k3, k4, k5 = jax.random.split(key, 5)
    x = jax.random.normal(k1, (batch, 1, size, feature_len), jnp.float32)
    conv_w = jax.random.normal(k2, (csize, 1, kh, kw), jnp.float32) * 0.3
    conv_b = jax.random.normal(k3, (csize,), jnp.float32) * 0.1
    fc_in = csize * (size // 2) * (feature_len // 2)
    fc_w = jax.random.normal(k4, (csize, fc_in), jnp.float32) * 0.1
    fc_b = jax.random.normal(k5, (csize,), jnp.float32) * 0.1

    fwd = jax.jit(formhead_forward)
    out = fwd(x, conv_w, conv_b, fc_w, fc_b)
    out = jax.block_until_ready(out)

    ref = ref_forward(x, conv_w, conv_b, fc_w, fc_b)
    assert out.shape == (batch, csize)
    # bf16 MXU inputs / bf16 pooled activations with f32 accumulation ->
    # slightly relaxed tolerance vs the pure-f32 reference.
    np.testing.assert_allclose(np.asarray(out), np.asarray(ref),
                               rtol=2e-2, atol=2e-2)
    print("KERNEL_OK")
</pallas_src>

<mosaic_0001>
module attributes {stable_mosaic.version = 11 : i64} {
  func.func @_formhead_kernel(%arg0: i32, %arg1: memref<1x9x16x16xf32, #tpu.memory_space<vmem>>, %arg2: memref<2x4x1x128xf32, #tpu.memory_space<vmem>>, %arg3: memref<2x1x128xf32, #tpu.memory_space<vmem>>, %arg4: memref<256x128xbf16, #tpu.memory_space<vmem>>, %arg5: memref<1x128xf32, #tpu.memory_space<vmem>>, %arg6: memref<16x128xf32, #tpu.memory_space<vmem>>, %arg7: memref<16x256xbf16, #tpu.memory_space<vmem>>) attributes {dimension_semantics = [#tpu.dimension_semantics<parallel>], iteration_bounds = array<i64: 2>, scalar_prefetch = 0 : i64, scratch_operands = 1 : i64, tpu.core_type = #tpu.core_type<tc>, window_params = [{transform_indices = @transform_0, window_bounds = array<i64: 1, 9, 16, 16>}, {pipeline_mode = #tpu.pipeline_mode<synchronous>, transform_indices = @transform_1, window_bounds = array<i64: 2, 4, 1, 128>}, {pipeline_mode = #tpu.pipeline_mode<synchronous>, transform_indices = @transform_2, window_bounds = array<i64: 2, 1, 128>}, {pipeline_mode = #tpu.pipeline_mode<synchronous>, transform_indices = @transform_3, window_bounds = array<i64: 256, 128>}, {pipeline_mode = #tpu.pipeline_mode<synchronous>, transform_indices = @transform_4, window_bounds = array<i64: 1, 128>}, {transform_indices = @transform_5, window_bounds = array<i64: 16, 128>}]} {
    %c0 = arith.constant 0 : index
    %c0_0 = arith.constant 0 : index
    %c0_1 = arith.constant 0 : index
    %c0_2 = arith.constant 0 : index
    %0 = vector.load %arg1[%c0, %c0_0, %c0_1, %c0_2] : memref<1x9x16x16xf32, #tpu.memory_space<vmem>>, vector<1x1x16x16xf32>
    %1 = vector.shape_cast %0 : vector<1x1x16x16xf32> to vector<16x16xf32>
    %2 = tpu.concatenate %1, %1 in 1 : vector<16x16xf32>, vector<16x16xf32> -> vector<16x32xf32>
    %3 = tpu.concatenate %2, %2 in 1 : vector<16x32xf32>, vector<16x32xf32> -> vector<16x64xf32>
    %4 = tpu.concatenate %3, %3 in 1 : vector<16x64xf32>, vector<16x64xf32> -> vector<16x128xf32>
    %c0_3 = arith.constant 0 : index
    %c1 = arith.constant 1 : index
    %c0_4 = arith.constant 0 : index
    %c0_5 = arith.constant 0 : index
    %5 = vector.load %arg1[%c0_3, %c1, %c0_4, %c0_5] : memref<1x9x16x16xf32, #tpu.memory_space<vmem>>, vector<1x1x16x16xf32>
    %6 = vector.shape_cast %5 : vector<1x1x16x16xf32> to vector<16x16xf32>
    %7 = tpu.concatenate %6, %6 in 1 : vector<16x16xf32>, vector<16x16xf32> -> vector<16x32xf32>
    %8 = tpu.concatenate %7, %7 in 1 : vector<16x32xf32>, vector<16x32xf32> -> vector<16x64xf32>
    %9 = tpu.concatenate %8, %8 in 1 : vector<16x64xf32>, vector<16x64xf32> -> vector<16x128xf32>
    %c0_6 = arith.constant 0 : index
    %c2 = arith.constant 2 : index
    %c0_7 = arith.constant 0 : index
    %c0_8 = arith.constant 0 : index
    %10 = vector.load %arg1[%c0_6, %c2, %c0_7, %c0_8] : memref<1x9x16x16xf32, #tpu.memory_space<vmem>>, vector<1x1x16x16xf32>
    %11 = vector.shape_cast %10 : vector<1x1x16x16xf32> to vector<16x16xf32>
    %12 = tpu.concatenate %11, %11 in 1 : vector<16x16xf32>, vector<16x16xf32> -> vector<16x32xf32>
    %13 = tpu.concatenate %12, %12 in 1 : vector<16x32xf32>, vector<16x32xf32> -> vector<16x64xf32>
    %14 = tpu.concatenate %13, %13 in 1 : vector<16x64xf32>, vector<16x64xf32> -> vector<16x128xf32>
    %c0_9 = arith.constant 0 : index
    %c3 = arith.constant 3 : index
    %c0_10 = arith.constant 0 : index
    %c0_11 = arith.constant 0 : index
    %15 = vector.load %arg1[%c0_9, %c3, %c0_10, %c0_11] : memref<1x9x16x16xf32, #tpu.memory_space<vmem>>, vector<1x1x16x16xf32>
    %16 = vector.shape_cast %15 : vector<1x1x16x16xf32> to vector<16x16xf32>
    %17 = tpu.concatenate %16, %16 in 1 : vector<16x16xf32>, vector<16x16xf32> -> vector<16x32xf32>
    %18 = tpu.concatenate %17, %17 in 1 : vector<16x32xf32>, vector<16x32xf32> -> vector<16x64xf32>
    %19 = tpu.concatenate %18, %18 in 1 : vector<16x64xf32>, vector<16x64xf32> -> vector<16x128xf32>
    %c0_12 = arith.constant 0 : index
    %c4 = arith.constant 4 : index
    %c0_13 = arith.constant 0 : index
    %c0_14 = arith.constant 0 : index
    %20 = vector.load %arg1[%c0_12, %c4, %c0_13, %c0_14] : memref<1x9x16x16xf32, #tpu.memory_space<vmem>>, vector<1x1x16x16xf32>
    %21 = vector.shape_cast %20 : vector<1x1x16x16xf32> to vector<16x16xf32>
    %22 = tpu.concatenate %21, %21 in 1 : vector<16x16xf32>, vector<16x16xf32> -> vector<16x32xf32>
    %23 = tpu.concatenate %22, %22 in 1 : vector<16x32xf32>, vector<16x32xf32> -> vector<16x64xf32>
    %24 = tpu.concatenate %23, %23 in 1 : vector<16x64xf32>, vector<16x64xf32> -> vector<16x128xf32>
    %c0_15 = arith.constant 0 : index
    %c5 = arith.constant 5 : index
    %c0_16 = arith.constant 0 : index
    %c0_17 = arith.constant 0 : index
    %25 = vector.load %arg1[%c0_15, %c5, %c0_16, %c0_17] : memref<1x9x16x16xf32, #tpu.memory_space<vmem>>, vector<1x1x16x16xf32>
    %26 = vector.shape_cast %25 : vector<1x1x16x16xf32> to vector<16x16xf32>
    %27 = tpu.concatenate %26, %26 in 1 : vector<16x16xf32>, vector<16x16xf32> -> vector<16x32xf32>
    %28 = tpu.concatenate %27, %27 in 1 : vector<16x32xf32>, vector<16x32xf32> -> vector<16x64xf32>
    %29 = tpu.concatenate %28, %28 in 1 : vector<16x64xf32>, vector<16x64xf32> -> vector<16x128xf32>
    %c0_18 = arith.constant 0 : index
    %c6 = arith.constant 6 : index
    %c0_19 = arith.constant 0 : index
    %c0_20 = arith.constant 0 : index
    %30 = vector.load %arg1[%c0_18, %c6, %c0_19, %c0_20] : memref<1x9x16x16xf32, #tpu.memory_space<vmem>>, vector<1x1x16x16xf32>
    %31 = vector.shape_cast %30 : vector<1x1x16x16xf32> to vector<16x16xf32>
    %32 = tpu.concatenate %31, %31 in 1 : vector<16x16xf32>, vector<16x16xf32> -> vector<16x32xf32>
    %33 = tpu.concatenate %32, %32 in 1 : vector<16x32xf32>, vector<16x32xf32> -> vector<16x64xf32>
    %34 = tpu.concatenate %33, %33 in 1 : vector<16x64xf32>, vector<16x64xf32> -> vector<16x128xf32>
    %c0_21 = arith.constant 0 : index
    %c7 = arith.constant 7 : index
    %c0_22 = arith.constant 0 : index
    %c0_23 = arith.constant 0 : index
    %35 = vector.load %arg1[%c0_21, %c7, %c0_22, %c0_23] : memref<1x9x16x16xf32, #tpu.memory_space<vmem>>, vector<1x1x16x16xf32>
    %36 = vector.shape_cast %35 : vector<1x1x16x16xf32> to vector<16x16xf32>
    %37 = tpu.concatenate %36, %36 in 1 : vector<16x16xf32>, vector<16x16xf32> -> vector<16x32xf32>
    %38 = tpu.concatenate %37, %37 in 1 : vector<16x32xf32>, vector<16x32xf32> -> vector<16x64xf32>
    %39 = tpu.concatenate %38, %38 in 1 : vector<16x64xf32>, vector<16x64xf32> -> vector<16x128xf32>
    %c0_24 = arith.constant 0 : index
    %c8 = arith.constant 8 : index
    %c0_25 = arith.constant 0 : index
    %c0_26 = arith.constant 0 : index
    %40 = vector.load %arg1[%c0_24, %c8, %c0_25, %c0_26] : memref<1x9x16x16xf32, #tpu.memory_space<vmem>>, vector<1x1x16x16xf32>
    %41 = vector.shape_cast %40 : vector<1x1x16x16xf32> to vector<16x16xf32>
    %42 = tpu.concatenate %41, %41 in 1 : vector<16x16xf32>, vector<16x16xf32> -> vector<16x32xf32>
    %43 = tpu.concatenate %42, %42 in 1 : vector<16x32xf32>, vector<16x32xf32> -> vector<16x64xf32>
    %44 = tpu.concatenate %43, %43 in 1 : vector<16x64xf32>, vector<16x64xf32> -> vector<16x128xf32>
    %c0_27 = arith.constant 0 : index
    %c0_28 = arith.constant 0 : index
    %c0_29 = arith.constant 0 : index
    %c0_30 = arith.constant 0 : index
    %45 = vector.load %arg2[%c0_27, %c0_28, %c0_29, %c0_30] : memref<2x4x1x128xf32, #tpu.memory_space<vmem>>, vector<1x1x1x128xf32>
    %46 = vector.shape_cast %45 : vector<1x1x1x128xf32> to vector<1x128xf32>
    %47 = vector.broadcast %46 : vector<1x128xf32> to vector<16x128xf32>
    %48 = arith.mulf %4, %47 : vector<16x128xf32>
    %c0_31 = arith.constant 0 : index
    %c1_32 = arith.constant 1 : index
    %c0_33 = arith.constant 0 : index
    %c0_34 = arith.constant 0 : index
    %49 = vector.load %arg2[%c0_31, %c1_32, %c0_33, %c0_34] : memref<2x4x1x128xf32, #tpu.memory_space<vmem>>, vector<1x1x1x128xf32>
    %50 = vector.shape_cast %49 : vector<1x1x1x128xf32> to vector<1x128xf32>
    %51 = vector.broadcast %50 : vector<1x128xf32> to vector<16x128xf32>
    %52 = arith.mulf %9, %51 : vector<16x128xf32>
    %53 = arith.addf %48, %52 : vector<16x128xf32>
    %c0_35 = arith.constant 0 : index
    %c2_36 = arith.constant 2 : index
    %c0_37 = arith.constant 0 : index
    %c0_38 = arith.constant 0 : index
    %54 = vector.load %arg2[%c0_35, %c2_36, %c0_37, %c0_38] : memref<2x4x1x128xf32, #tpu.memory_space<vmem>>, vector<1x1x1x128xf32>
    %55 = vector.shape_cast %54 : vector<1x1x1x128xf32> to vector<1x128xf32>
    %56 = vector.broadcast %55 : vector<1x128xf32> to vector<16x128xf32>
    %57 = arith.mulf %19, %56 : vector<16x128xf32>
    %58 = arith.addf %53, %57 : vector<16x128xf32>
    %c0_39 = arith.constant 0 : index
    %c3_40 = arith.constant 3 : index
    %c0_41 = arith.constant 0 : index
    %c0_42 = arith.constant 0 : index
    %59 = vector.load %arg2[%c0_39, %c3_40, %c0_41, %c0_42] : memref<2x4x1x128xf32, #tpu.memory_space<vmem>>, vector<1x1x1x128xf32>
    %60 = vector.shape_cast %59 : vector<1x1x1x128xf32> to vector<1x128xf32>
    %61 = vector.broadcast %60 : vector<1x128xf32> to vector<16x128xf32>
    %62 = arith.mulf %24, %61 : vector<16x128xf32>
    %63 = arith.addf %58, %62 : vector<16x128xf32>
    %c0_43 = arith.constant 0 : index
    %c0_44 = arith.constant 0 : index
    %c0_45 = arith.constant 0 : index
    %64 = vector.load %arg3[%c0_43, %c0_44, %c0_45] : memref<2x1x128xf32, #tpu.memory_space<vmem>>, vector<1x1x128xf32>
    %65 = vector.shape_cast %64 : vector<1x1x128xf32> to vector<1x128xf32>
    %66 = vector.broadcast %65 : vector<1x128xf32> to vector<16x128xf32>
    %67 = arith.addf %63, %66 : vector<16x128xf32>
    %cst = arith.constant 0.000000e+00 : f32
    %68 = vector.broadcast %cst : f32 to vector<16x128xf32>
    %69 = arith.cmpf ogt, %67, %68 : vector<16x128xf32>
    %cst_46 = arith.constant 0.00999999977 : f32
    %70 = vector.broadcast %cst_46 : f32 to vector<16x128xf32>
    %71 = arith.mulf %70, %67 : vector<16x128xf32>
    %72 = arith.select %69, %67, %71 : vector<16x128xi1>, vector<16x128xf32>
    %c0_47 = arith.constant 0 : index
    %c0_48 = arith.constant 0 : index
    %c0_49 = arith.constant 0 : index
    %c0_50 = arith.constant 0 : index
    %73 = vector.load %arg2[%c0_47, %c0_48, %c0_49, %c0_50] : memref<2x4x1x128xf32, #tpu.memory_space<vmem>>, vector<1x1x1x128xf32>
    %74 = vector.shape_cast %73 : vector<1x1x1x128xf32> to vector<1x128xf32>
    %75 = vector.broadcast %74 : vector<1x128xf32> to vector<16x128xf32>
    %76 = arith.mulf %9, %75 : vector<16x128xf32>
    %c0_51 = arith.constant 0 : index
    %c1_52 = arith.constant 1 : index
    %c0_53 = arith.constant 0 : index
    %c0_54 = arith.constant 0 : index
    %77 = vector.load %arg2[%c0_51, %c1_52, %c0_53, %c0_54] : memref<2x4x1x128xf32, #tpu.memory_space<vmem>>, vector<1x1x1x128xf32>
    %78 = vector.shape_cast %77 : vector<1x1x1x128xf32> to vector<1x128xf32>
    %79 = vector.broadcast %78 : vector<1x128xf32> to vector<16x128xf32>
    %80 = arith.mulf %14, %79 : vector<16x128xf32>
    %81 = arith.addf %76, %80 : vector<16x128xf32>
    %c0_55 = arith.constant 0 : index
    %c2_56 = arith.constant 2 : index
    %c0_57 = arith.constant 0 : index
    %c0_58 = arith.constant 0 : index
    %82 = vector.load %arg2[%c0_55, %c2_56, %c0_57, %c0_58] : memref<2x4x1x128xf32, #tpu.memory_space<vmem>>, vector<1x1x1x128xf32>
    %83 = vector.shape_cast %82 : vector<1x1x1x128xf32> to vector<1x128xf32>
    %84 = vector.broadcast %83 : vector<1x128xf32> to vector<16x128xf32>
    %85 = arith.mulf %24, %84 : vector<16x128xf32>
    %86 = arith.addf %81, %85 : vector<16x128xf32>
    %c0_59 = arith.constant 0 : index
    %c3_60 = arith.constant 3 : index
    %c0_61 = arith.constant 0 : index
    %c0_62 = arith.constant 0 : index
    %87 = vector.load %arg2[%c0_59, %c3_60, %c0_61, %c0_62] : memref<2x4x1x128xf32, #tpu.memory_space<vmem>>, vector<1x1x1x128xf32>
    %88 = vector.shape_cast %87 : vector<1x1x1x128xf32> to vector<1x128xf32>
    %89 = vector.broadcast %88 : vector<1x128xf32> to vector<16x128xf32>
    %90 = arith.mulf %29, %89 : vector<16x128xf32>
    %91 = arith.addf %86, %90 : vector<16x128xf32>
    %c0_63 = arith.constant 0 : index
    %c0_64 = arith.constant 0 : index
    %c0_65 = arith.constant 0 : index
    %92 = vector.load %arg3[%c0_63, %c0_64, %c0_65] : memref<2x1x128xf32, #tpu.memory_space<vmem>>, vector<1x1x128xf32>
    %93 = vector.shape_cast %92 : vector<1x1x128xf32> to vector<1x128xf32>
    %94 = vector.broadcast %93 : vector<1x128xf32> to vector<16x128xf32>
    %95 = arith.addf %91, %94 : vector<16x128xf32>
    %cst_66 = arith.constant 0.000000e+00 : f32
    %96 = vector.broadcast %cst_66 : f32 to vector<16x128xf32>
    %97 = arith.cmpf ogt, %95, %96 : vector<16x128xf32>
    %cst_67 = arith.constant 0.00999999977 : f32
    %98 = vector.broadcast %cst_67 : f32 to vector<16x128xf32>
    %99 = arith.mulf %98, %95 : vector<16x128xf32>
    %100 = arith.select %97, %95, %99 : vector<16x128xi1>, vector<16x128xf32>
    %101 = arith.maximumf %72, %100 : vector<16x128xf32>
    %c0_68 = arith.constant 0 : index
    %c0_69 = arith.constant 0 : index
    %c0_70 = arith.constant 0 : index
    %c0_71 = arith.constant 0 : index
    %102 = vector.load %arg2[%c0_68, %c0_69, %c0_70, %c0_71] : memref<2x4x1x128xf32, #tpu.memory_space<vmem>>, vector<1x1x1x128xf32>
    %103 = vector.shape_cast %102 : vector<1x1x1x128xf32> to vector<1x128xf32>
    %104 = vector.broadcast %103 : vector<1x128xf32> to vector<16x128xf32>
    %105 = arith.mulf %19, %104 : vector<16x128xf32>
    %c0_72 = arith.constant 0 : index
    %c1_73 = arith.constant 1 : index
    %c0_74 = arith.constant 0 : index
    %c0_75 = arith.constant 0 : index
    %106 = vector.load %arg2[%c0_72, %c1_73, %c0_74, %c0_75] : memref<2x4x1x128xf32, #tpu.memory_space<vmem>>, vector<1x1x1x128xf32>
    %107 = vector.shape_cast %106 : vector<1x1x1x128xf32> to vector<1x128xf32>
    %108 = vector.broadcast %107 : vector<1x128xf32> to vector<16x128xf32>
    %109 = arith.mulf %24, %108 : vector<16x128xf32>
    %110 = arith.addf %105, %109 : vector<16x128xf32>
    %c0_76 = arith.constant 0 : index
    %c2_77 = arith.constant 2 : index
    %c0_78 = arith.constant 0 : index
    %c0_79 = arith.constant 0 : index
    %111 = vector.load %arg2[%c0_76, %c2_77, %c0_78, %c0_79] : memref<2x4x1x128xf32, #tpu.memory_space<vmem>>, vector<1x1x1x128xf32>
    %112 = vector.shape_cast %111 : vector<1x1x1x128xf32> to vector<1x128xf32>
    %113 = vector.broadcast %112 : vector<1x128xf32> to vector<16x128xf32>
    %114 = arith.mulf %34, %113 : vector<16x128xf32>
    %115 = arith.addf %110, %114 : vector<16x128xf32>
    %c0_80 = arith.constant 0 : index
    %c3_81 = arith.constant 3 : index
    %c0_82 = arith.constant 0 : index
    %c0_83 = arith.constant 0 : index
    %116 = vector.load %arg2[%c0_80, %c3_81, %c0_82, %c0_83] : memref<2x4x1x128xf32, #tpu.memory_space<vmem>>, vector<1x1x1x128xf32>
    %117 = vector.shape_cast %116 : vector<1x1x1x128xf32> to vector<1x128xf32>
    %118 = vector.broadcast %117 : vector<1x128xf32> to vector<16x128xf32>
    %119 = arith.mulf %39, %118 : vector<16x128xf32>
    %120 = arith.addf %115, %119 : vector<16x128xf32>
    %c0_84 = arith.constant 0 : index
    %c0_85 = arith.constant 0 : index
    %c0_86 = arith.constant 0 : index
    %121 = vector.load %arg3[%c0_84, %c0_85, %c0_86] : memref<2x1x128xf32, #tpu.memory_space<vmem>>, vector<1x1x128xf32>
    %122 = vector.shape_cast %121 : vector<1x1x128xf32> to vector<1x128xf32>
    %123 = vector.broadcast %122 : vector<1x128xf32> to vector<16x128xf32>
    %124 = arith.addf %120, %123 : vector<16x128xf32>
    %cst_87 = arith.constant 0.000000e+00 : f32
    %125 = vector.broadcast %cst_87 : f32 to vector<16x128xf32>
    %126 = arith.cmpf ogt, %124, %125 : vector<16x128xf32>
    %cst_88 = arith.constant 0.00999999977 : f32
    %127 = vector.broadcast %cst_88 : f32 to vector<16x128xf32>
    %128 = arith.mulf %127, %124 : vector<16x128xf32>
    %129 = arith.select %126, %124, %128 : vector<16x128xi1>, vector<16x128xf32>
    %130 = arith.maximumf %101, %129 : vector<16x128xf32>
    %c0_89 = arith.constant 0 : index
    %c0_90 = arith.constant 0 : index
    %c0_91 = arith.constant 0 : index
    %c0_92 = arith.constant 0 : index
    %131 = vector.load %arg2[%c0_89, %c0_90, %c0_91, %c0_92] : memref<2x4x1x128xf32, #tpu.memory_space<vmem>>, vector<1x1x1x128xf32>
    %132 = vector.shape_cast %131 : vector<1x1x1x128xf32> to vector<1x128xf32>
    %133 = vector.broadcast %132 : vector<1x128xf32> to vector<16x128xf32>
    %134 = arith.mulf %24, %133 : vector<16x128xf32>
    %c0_93 = arith.constant 0 : index
    %c1_94 = arith.constant 1 : index
    %c0_95 = arith.constant 0 : index
    %c0_96 = arith.constant 0 : index
    %135 = vector.load %arg2[%c0_93, %c1_94, %c0_95, %c0_96] : memref<2x4x1x128xf32, #tpu.memory_space<vmem>>, vector<1x1x1x128xf32>
    %136 = vector.shape_cast %135 : vector<1x1x1x128xf32> to vector<1x128xf32>
    %137 = vector.broadcast %136 : vector<1x128xf32> to vector<16x128xf32>
    %138 = arith.mulf %29, %137 : vector<16x128xf32>
    %139 = arith.addf %134, %138 : vector<16x128xf32>
    %c0_97 = arith.constant 0 : index
    %c2_98 = arith.constant 2 : index
    %c0_99 = arith.constant 0 : index
    %c0_100 = arith.constant 0 : index
    %140 = vector.load %arg2[%c0_97, %c2_98, %c0_99, %c0_100] : memref<2x4x1x128xf32, #tpu.memory_space<vmem>>, vector<1x1x1x128xf32>
    %141 = vector.shape_cast %140 : vector<1x1x1x128xf32> to vector<1x128xf32>
    %142 = vector.broadcast %141 : vector<1x128xf32> to vector<16x128xf32>
    %143 = arith.mulf %39, %142 : vector<16x128xf32>
    %144 = arith.addf %139, %143 : vector<16x128xf32>
    %c0_101 = arith.constant 0 : index
    %c3_102 = arith.constant 3 : index
    %c0_103 = arith.constant 0 : index
    %c0_104 = arith.constant 0 : index
    %145 = vector.load %arg2[%c0_101, %c3_102, %c0_103, %c0_104] : memref<2x4x1x128xf32, #tpu.memory_space<vmem>>, vector<1x1x1x128xf32>
    %146 = vector.shape_cast %145 : vector<1x1x1x128xf32> to vector<1x128xf32>
    %147 = vector.broadcast %146 : vector<1x128xf32> to vector<16x128xf32>
    %148 = arith.mulf %44, %147 : vector<16x128xf32>
    %149 = arith.addf %144, %148 : vector<16x128xf32>
    %c0_105 = arith.constant 0 : index
    %c0_106 = arith.constant 0 : index
    %c0_107 = arith.constant 0 : index
    %150 = vector.load %arg3[%c0_105, %c0_106, %c0_107] : memref<2x1x128xf32, #tpu.memory_space<vmem>>, vector<1x1x128xf32>
    %151 = vector.shape_cast %150 : vector<1x1x128xf32> to vector<1x128xf32>
    %152 = vector.broadcast %151 : vector<1x128xf32> to vector<16x128xf32>
    %153 = arith.addf %149, %152 : vector<16x128xf32>
    %cst_108 = arith.constant 0.000000e+00 : f32
    %154 = vector.broadcast %cst_108 : f32 to vector<16x128xf32>
    %155 = arith.cmpf ogt, %153, %154 : vector<16x128xf32>
    %cst_109 = arith.constant 0.00999999977 : f32
    %156 = vector.broadcast %cst_109 : f32 to vector<16x128xf32>
    %157 = arith.mulf %156, %153 : vector<16x128xf32>
    %158 = arith.select %155, %153, %157 : vector<16x128xi1>, vector<16x128xf32>
    %159 = arith.maximumf %130, %158 : vector<16x128xf32>
    %160 = arith.truncf %159 : vector<16x128xf32> to vector<16x128xbf16>
    %c0_110 = arith.constant 0 : index
    %c0_111 = arith.constant 0 : index
    %161 = vector.load %arg7[%c0_110, %c0_111] : memref<16x256xbf16, #tpu.memory_space<vmem>>, vector<16x128xbf16>
    tpu.vector_store %arg7[%c0_110, %c0_111], %160 {strides = array<i32>} : memref<16x256xbf16, #tpu.memory_space<vmem>>, vector<16x128xbf16>,
    %c1_112 = arith.constant 1 : index
    %c0_113 = arith.constant 0 : index
    %c0_114 = arith.constant 0 : index
    %c0_115 = arith.constant 0 : index
    %162 = vector.load %arg2[%c1_112, %c0_113, %c0_114, %c0_115] : memref<2x4x1x128xf32, #tpu.memory_space<vmem>>, vector<1x1x1x128xf32>
    %163 = vector.shape_cast %162 : vector<1x1x1x128xf32> to vector<1x128xf32>
    %164 = vector.broadcast %163 : vector<1x128xf32> to vector<16x128xf32>
    %165 = arith.mulf %4, %164 : vector<16x128xf32>
    %c1_116 = arith.constant 1 : index
    %c1_117 = arith.constant 1 : index
    %c0_118 = arith.constant 0 : index
    %c0_119 = arith.constant 0 : index
    %166 = vector.load %arg2[%c1_116, %c1_117, %c0_118, %c0_119] : memref<2x4x1x128xf32, #tpu.memory_space<vmem>>, vector<1x1x1x128xf32>
    %167 = vector.shape_cast %166 : vector<1x1x1x128xf32> to vector<1x128xf32>
    %168 = vector.broadcast %167 : vector<1x128xf32> to vector<16x128xf32>
    %169 = arith.mulf %9, %168 : vector<16x128xf32>
    %170 = arith.addf %165, %169 : vector<16x128xf32>
    %c1_120 = arith.constant 1 : index
    %c2_121 = arith.constant 2 : index
    %c0_122 = arith.constant 0 : index
    %c0_123 = arith.constant 0 : index
    %171 = vector.load %arg2[%c1_120, %c2_121, %c0_122, %c0_123] : memref<2x4x1x128xf32, #tpu.memory_space<vmem>>, vector<1x1x1x128xf32>
    %172 = vector.shape_cast %171 : vector<1x1x1x128xf32> to vector<1x128xf32>
    %173 = vector.broadcast %172 : vector<1x128xf32> to vector<16x128xf32>
    %174 = arith.mulf %19, %173 : vector<16x128xf32>
    %175 = arith.addf %170, %174 : vector<16x128xf32>
    %c1_124 = arith.constant 1 : index
    %c3_125 = arith.constant 3 : index
    %c0_126 = arith.constant 0 : index
    %c0_127 = arith.constant 0 : index
    %176 = vector.load %arg2[%c1_124, %c3_125, %c0_126, %c0_127] : memref<2x4x1x128xf32, #tpu.memory_space<vmem>>, vector<1x1x1x128xf32>
    %177 = vector.shape_cast %176 : vector<1x1x1x128xf32> to vector<1x128xf32>
    %178 = vector.broadcast %177 : vector<1x128xf32> to vector<16x128xf32>
    %179 = arith.mulf %24, %178 : vector<16x128xf32>
    %180 = arith.addf %175, %179 : vector<16x128xf32>
    %c1_128 = arith.constant 1 : index
    %c0_129 = arith.constant 0 : index
    %c0_130 = arith.constant 0 : index
    %181 = vector.load %arg3[%c1_128, %c0_129, %c0_130] : memref<2x1x128xf32, #tpu.memory_space<vmem>>, vector<1x1x128xf32>
    %182 = vector.shape_cast %181 : vector<1x1x128xf32> to vector<1x128xf32>
    %183 = vector.broadcast %182 : vector<1x128xf32> to vector<16x128xf32>
    %184 = arith.addf %180, %183 : vector<16x128xf32>
    %cst_131 = arith.constant 0.000000e+00 : f32
    %185 = vector.broadcast %cst_131 : f32 to vector<16x128xf32>
    %186 = arith.cmpf ogt, %184, %185 : vector<16x128xf32>
    %cst_132 = arith.constant 0.00999999977 : f32
    %187 = vector.broadcast %cst_132 : f32 to vector<16x128xf32>
    %188 = arith.mulf %187, %184 : vector<16x128xf32>
    %189 = arith.select %186, %184, %188 : vector<16x128xi1>, vector<16x128xf32>
    %c1_133 = arith.constant 1 : index
    %c0_134 = arith.constant 0 : index
    %c0_135 = arith.constant 0 : index
    %c0_136 = arith.constant 0 : index
    %190 = vector.load %arg2[%c1_133, %c0_134, %c0_135, %c0_136] : memref<2x4x1x128xf32, #tpu.memory_space<vmem>>, vector<1x1x1x128xf32>
    %191 = vector.shape_cast %190 : vector<1x1x1x128xf32> to vector<1x128xf32>
    %192 = vector.broadcast %191 : vector<1x128xf32> to vector<16x128xf32>
    %193 = arith.mulf %9, %192 : vector<16x128xf32>
    %c1_137 = arith.constant 1 : index
    %c1_138 = arith.constant 1 : index
    %c0_139 = arith.constant 0 : index
    %c0_140 = arith.constant 0 : index
    %194 = vector.load %arg2[%c1_137, %c1_138, %c0_139, %c0_140] : memref<2x4x1x128xf32, #tpu.memory_space<vmem>>, vector<1x1x1x128xf32>
    %195 = vector.shape_cast %194 : vector<1x1x1x128xf32> to vector<1x128xf32>
    %196 = vector.broadcast %195 : vector<1x128xf32> to vector<16x128xf32>
    %197 = arith.mulf %14, %196 : vector<16x128xf32>
    %198 = arith.addf %193, %197 : vector<16x128xf32>
    %c1_141 = arith.constant 1 : index
    %c2_142 = arith.constant 2 : index
    %c0_143 = arith.constant 0 : index
    %c0_144 = arith.constant 0 : index
    %199 = vector.load %arg2[%c1_141, %c2_142, %c0_143, %c0_144] : memref<2x4x1x128xf32, #tpu.memory_space<vmem>>, vector<1x1x1x128xf32>
    %200 = vector.shape_cast %199 : vector<1x1x1x128xf32> to vector<1x128xf32>
    %201 = vector.broadcast %200 : vector<1x128xf32> to vector<16x128xf32>
    %202 = arith.mulf %24, %201 : vector<16x128xf32>
    %203 = arith.addf %198, %202 : vector<16x128xf32>
    %c1_145 = arith.constant 1 : index
    %c3_146 = arith.constant 3 : index
    %c0_147 = arith.constant 0 : index
    %c0_148 = arith.constant 0 : index
    %204 = vector.load %arg2[%c1_145, %c3_146, %c0_147, %c0_148] : memref<2x4x1x128xf32, #tpu.memory_space<vmem>>, vector<1x1x1x128xf32>
    %205 = vector.shape_cast %204 : vector<1x1x1x128xf32> to vector<1x128xf32>
    %206 = vector.broadcast %205 : vector<1x128xf32> to vector<16x128xf32>
    %207 = arith.mulf %29, %206 : vector<16x128xf32>
    %208 = arith.addf %203, %207 : vector<16x128xf32>
    %c1_149 = arith.constant 1 : index
    %c0_150 = arith.constant 0 : index
    %c0_151 = arith.constant 0 : index
    %209 = vector.load %arg3[%c1_149, %c0_150, %c0_151] : memref<2x1x128xf32, #tpu.memory_space<vmem>>, vector<1x1x128xf32>
    %210 = vector.shape_cast %209 : vector<1x1x128xf32> to vector<1x128xf32>
    %211 = vector.broadcast %210 : vector<1x128xf32> to vector<16x128xf32>
    %212 = arith.addf %208, %211 : vector<16x128xf32>
    %cst_152 = arith.constant 0.000000e+00 : f32
    %213 = vector.broadcast %cst_152 : f32 to vector<16x128xf32>
    %214 = arith.cmpf ogt, %212, %213 : vector<16x128xf32>
    %cst_153 = arith.constant 0.00999999977 : f32
    %215 = vector.broadcast %cst_153 : f32 to vector<16x128xf32>
    %216 = arith.mulf %215, %212 : vector<16x128xf32>
    %217 = arith.select %214, %212, %216 : vector<16x128xi1>, vector<16x128xf32>
    %218 = arith.maximumf %189, %217 : vector<16x128xf32>
    %c1_154 = arith.constant 1 : index
    %c0_155 = arith.constant 0 : index
    %c0_156 = arith.constant 0 : index
    %c0_157 = arith.constant 0 : index
    %219 = vector.load %arg2[%c1_154, %c0_155, %c0_156, %c0_157] : memref<2x4x1x128xf32, #tpu.memory_space<vmem>>, vector<1x1x1x128xf32>
    %220 = vector.shape_cast %219 : vector<1x1x1x128xf32> to vector<1x128xf32>
    %221 = vector.broadcast %220 : vector<1x128xf32> to vector<16x128xf32>
    %222 = arith.mulf %19, %221 : vector<16x128xf32>
    %c1_158 = arith.constant 1 : index
    %c1_159 = arith.constant 1 : index
    %c0_160 = arith.constant 0 : index
    %c0_161 = arith.constant 0 : index
    %223 = vector.load %arg2[%c1_158, %c1_159, %c0_160, %c0_161] : memref<2x4x1x128xf32, #tpu.memory_space<vmem>>, vector<1x1x1x128xf32>
    %224 = vector.shape_cast %223 : vector<1x1x1x128xf32> to vector<1x128xf32>
    %225 = vector.broadcast %224 : vector<1x128xf32> to vector<16x128xf32>
    %226 = arith.mulf %24, %225 : vector<16x128xf32>
    %227 = arith.addf %222, %226 : vector<16x128xf32>
    %c1_162 = arith.constant 1 : index
    %c2_163 = arith.constant 2 : index
    %c0_164 = arith.constant 0 : index
    %c0_165 = arith.constant 0 : index
    %228 = vector.load %arg2[%c1_162, %c2_163, %c0_164, %c0_165] : memref<2x4x1x128xf32, #tpu.memory_space<vmem>>, vector<1x1x1x128xf32>
    %229 = vector.shape_cast %228 : vector<1x1x1x128xf32> to vector<1x128xf32>
    %230 = vector.broadcast %229 : vector<1x128xf32> to vector<16x128xf32>
    %231 = arith.mulf %34, %230 : vector<16x128xf32>
    %232 = arith.addf %227, %231 : vector<16x128xf32>
    %c1_166 = arith.constant 1 : index
    %c3_167 = arith.constant 3 : index
    %c0_168 = arith.constant 0 : index
    %c0_169 = arith.constant 0 : index
    %233 = vector.load %arg2[%c1_166, %c3_167, %c0_168, %c0_169] : memref<2x4x1x128xf32, #tpu.memory_space<vmem>>, vector<1x1x1x128xf32>
    %234 = vector.shape_cast %233 : vector<1x1x1x128xf32> to vector<1x128xf32>
    %235 = vector.broadcast %234 : vector<1x128xf32> to vector<16x128xf32>
    %236 = arith.mulf %39, %235 : vector<16x128xf32>
    %237 = arith.addf %232, %236 : vector<16x128xf32>
    %c1_170 = arith.constant 1 : index
    %c0_171 = arith.constant 0 : index
    %c0_172 = arith.constant 0 : index
    %238 = vector.load %arg3[%c1_170, %c0_171, %c0_172] : memref<2x1x128xf32, #tpu.memory_space<vmem>>, vector<1x1x128xf32>
    %239 = vector.shape_cast %238 : vector<1x1x128xf32> to vector<1x128xf32>
    %240 = vector.broadcast %239 : vector<1x128xf32> to vector<16x128xf32>
    %241 = arith.addf %237, %240 : vector<16x128xf32>
    %cst_173 = arith.constant 0.000000e+00 : f32
    %242 = vector.broadcast %cst_173 : f32 to vector<16x128xf32>
    %243 = arith.cmpf ogt, %241, %242 : vector<16x128xf32>
    %cst_174 = arith.constant 0.00999999977 : f32
    %244 = vector.broadcast %cst_174 : f32 to vector<16x128xf32>
    %245 = arith.mulf %244, %241 : vector<16x128xf32>
    %246 = arith.select %243, %241, %245 : vector<16x128xi1>, vector<16x128xf32>
    %247 = arith.maximumf %218, %246 : vector<16x128xf32>
    %c1_175 = arith.constant 1 : index
    %c0_176 = arith.constant 0 : index
    %c0_177 = arith.constant 0 : index
    %c0_178 = arith.constant 0 : index
    %248 = vector.load %arg2[%c1_175, %c0_176, %c0_177, %c0_178] : memref<2x4x1x128xf32, #tpu.memory_space<vmem>>, vector<1x1x1x128xf32>
    %249 = vector.shape_cast %248 : vector<1x1x1x128xf32> to vector<1x128xf32>
    %250 = vector.broadcast %249 : vector<1x128xf32> to vector<16x128xf32>
    %251 = arith.mulf %24, %250 : vector<16x128xf32>
    %c1_179 = arith.constant 1 : index
    %c1_180 = arith.constant 1 : index
    %c0_181 = arith.constant 0 : index
    %c0_182 = arith.constant 0 : index
    %252 = vector.load %arg2[%c1_179, %c1_180, %c0_181, %c0_182] : memref<2x4x1x128xf32, #tpu.memory_space<vmem>>, vector<1x1x1x128xf32>
    %253 = vector.shape_cast %252 : vector<1x1x1x128xf32> to vector<1x128xf32>
    %254 = vector.broadcast %253 : vector<1x128xf32> to vector<16x128xf32>
    %255 = arith.mulf %29, %254 : vector<16x128xf32>
    %256 = arith.addf %251, %255 : vector<16x128xf32>
    %c1_183 = arith.constant 1 : index
    %c2_184 = arith.constant 2 : index
    %c0_185 = arith.constant 0 : index
    %c0_186 = arith.constant 0 : index
    %257 = vector.load %arg2[%c1_183, %c2_184, %c0_185, %c0_186] : memref<2x4x1x128xf32, #tpu.memory_space<vmem>>, vector<1x1x1x128xf32>
    %258 = vector.shape_cast %257 : vector<1x1x1x128xf32> to vector<1x128xf32>
    %259 = vector.broadcast %258 : vector<1x128xf32> to vector<16x128xf32>
    %260 = arith.mulf %39, %259 : vector<16x128xf32>
    %261 = arith.addf %256, %260 : vector<16x128xf32>
    %c1_187 = arith.constant 1 : index
    %c3_188 = arith.constant 3 : index
    %c0_189 = arith.constant 0 : index
    %c0_190 = arith.constant 0 : index
    %262 = vector.load %arg2[%c1_187, %c3_188, %c0_189, %c0_190] : memref<2x4x1x128xf32, #tpu.memory_space<vmem>>, vector<1x1x1x128xf32>
    %263 = vector.shape_cast %262 : vector<1x1x1x128xf32> to vector<1x128xf32>
    %264 = vector.broadcast %263 : vector<1x128xf32> to vector<16x128xf32>
    %265 = arith.mulf %44, %264 : vector<16x128xf32>
    %266 = arith.addf %261, %265 : vector<16x128xf32>
    %c1_191 = arith.constant 1 : index
    %c0_192 = arith.constant 0 : index
    %c0_193 = arith.constant 0 : index
    %267 = vector.load %arg3[%c1_191, %c0_192, %c0_193] : memref<2x1x128xf32, #tpu.memory_space<vmem>>, vector<1x1x128xf32>
    %268 = vector.shape_cast %267 : vector<1x1x128xf32> to vector<1x128xf32>
    %269 = vector.broadcast %268 : vector<1x128xf32> to vector<16x128xf32>
    %270 = arith.addf %266, %269 : vector<16x128xf32>
    %cst_194 = arith.constant 0.000000e+00 : f32
    %271 = vector.broadcast %cst_194 : f32 to vector<16x128xf32>
    %272 = arith.cmpf ogt, %270, %271 : vector<16x128xf32>
    %cst_195 = arith.constant 0.00999999977 : f32
    %273 = vector.broadcast %cst_195 : f32 to vector<16x128xf32>
    %274 = arith.mulf %273, %270 : vector<16x128xf32>
    %275 = arith.select %272, %270, %274 : vector<16x128xi1>, vector<16x128xf32>
    %276 = arith.maximumf %247, %275 : vector<16x128xf32>
    %277 = arith.truncf %276 : vector<16x128xf32> to vector<16x128xbf16>
    %c0_196 = arith.constant 0 : index
    %c128 = arith.constant 128 : index
    %278 = vector.load %arg7[%c0_196, %c128] : memref<16x256xbf16, #tpu.memory_space<vmem>>, vector<16x128xbf16>
    tpu.vector_store %arg7[%c0_196, %c128], %277 {strides = array<i32>} : memref<16x256xbf16, #tpu.memory_space<vmem>>, vector<16x128xbf16>,
    %c0_197 = arith.constant 0 : index
    %c0_198 = arith.constant 0 : index
    %279 = vector.load %arg7[%c0_197, %c0_198] : memref<16x256xbf16, #tpu.memory_space<vmem>>, vector<16x256xbf16>
    %c0_199 = arith.constant 0 : index
    %c0_200 = arith.constant 0 : index
    %280 = vector.load %arg4[%c0_199, %c0_200] : memref<256x128xbf16, #tpu.memory_space<vmem>>, vector<256x128xbf16>
    %cst_201 = arith.constant dense<0.000000e+00> : vector<16x128xf32>
    %281 = tpu.matmul %279, %280, %cst_201 {dimension_numbers = #tpu.dot_dimension_numbers<[1], [0], [0], [1], [0, 0, 1, 1], [], []>} : vector<16x256xbf16>, vector<256x128xbf16>, vector<16x128xf32> -> vector<16x128xf32>
    %c0_202 = arith.constant 0 : index
    %c0_203 = arith.constant 0 : index
    %282 = vector.load %arg5[%c0_202, %c0_203] : memref<1x128xf32, #tpu.memory_space<vmem>>, vector<1x128xf32>
    %283 = vector.broadcast %282 : vector<1x128xf32> to vector<16x128xf32>
    %284 = arith.addf %281, %283 : vector<16x128xf32>
    %cst_204 = arith.constant 0.000000e+00 : f32
    %285 = vector.broadcast %cst_204 : f32 to vector<16x128xf32>
    %286 = arith.cmpf ogt, %284, %285 : vector<16x128xf32>
    %cst_205 = arith.constant 0.00999999977 : f32
    %287 = vector.broadcast %cst_205 : f32 to vector<16x128xf32>
    %288 = arith.mulf %287, %284 : vector<16x128xf32>
    %289 = arith.select %286, %284, %288 : vector<16x128xi1>, vector<16x128xf32>
    %c0_206 = arith.constant 0 : index
    %c0_207 = arith.constant 0 : index
    %290 = vector.load %arg6[%c0_206, %c0_207] : memref<16x128xf32, #tpu.memory_space<vmem>>, vector<16x128xf32>
    tpu.vector_store %arg6[%c0_206, %c0_207], %289 {strides = array<i32>} : memref<16x128xf32, #tpu.memory_space<vmem>>, vector<16x128xf32>,
    return
  }
  func.func @transform_0(%arg0: i32) -> (i32, i32, i32, i32) {
    %c0_i32 = arith.constant 0 : i32
    %c0_i32_0 = arith.constant 0 : i32
    %c0_i32_1 = arith.constant 0 : i32
    %c0_i32_2 = arith.constant 0 : i32
    return %arg0, %c0_i32, %c0_i32_0, %c0_i32_1 : i32, i32, i32, i32
  }
  func.func @transform_1(%arg0: i32) -> (i32, i32, i32, i32) {
    %c0_i32 = arith.constant 0 : i32
    %c0_i32_0 = arith.constant 0 : i32
    %c0_i32_1 = arith.constant 0 : i32
    %c0_i32_2 = arith.constant 0 : i32
    %c0_i32_3 = arith.constant 0 : i32
    return %c0_i32, %c0_i32_0, %c0_i32_1, %c0_i32_2 : i32, i32, i32, i32
  }
  func.func @transform_2(%arg0: i32) -> (i32, i32, i32) {
    %c0_i32 = arith.constant 0 : i32
    %c0_i32_0 = arith.constant 0 : i32
    %c0_i32_1 = arith.constant 0 : i32
    %c0_i32_2 = arith.constant 0 : i32
    return %c0_i32, %c0_i32_0, %c0_i32_1 : i32, i32, i32
  }
  func.func @transform_3(%arg0: i32) -> (i32, i32) {
    %c0_i32 = arith.constant 0 : i32
    %c0_i32_0 = arith.constant 0 : i32
    %c0_i32_1 = arith.constant 0 : i32
    return %c0_i32, %c0_i32_0 : i32, i32
  }
  func.func @transform_4(%arg0: i32) -> (i32, i32) {
    %c0_i32 = arith.constant 0 : i32
    %c0_i32_0 = arith.constant 0 : i32
    %c0_i32_1 = arith.constant 0 : i32
    return %c0_i32, %c0_i32_0 : i32, i32
  }
  func.func @transform_5(%arg0: i32) -> (i32, i32) {
    %c0_i32 = arith.constant 0 : i32
    %c0_i32_0 = arith.constant 0 : i32
    return %arg0, %c0_i32 : i32, i32
  }
}

</mosaic_0001>

<llo_original>
// kernel: formhead_forward.1
$region0: #{formhead_forward.1}
  #allocation0 [shape = 'u32[]', space=smem, size = 0x4, offset = 0x4, fixed_abs, tag = 'smem constant byte address 0x4 - core index']
  #allocation1 [shape = 'u32[144,128]{1,0:T(1,128)}', space=vmem, size = 0x12000, scoped, tag = 'internal scratch']
  #allocation2 [shape = 'bf16[16,256]{1,0:T(8,128)(2,1)}', space=vmem, size = 0x2000, scoped, tag = 'scratch operand']
  %s0 = inlined_call_operand.vmem [shape: f32[2,9,16,16], index: 0, kind: input, shape index: {}]
  %s1 = inlined_call_operand.vmem [shape: f32[2,4,1,128], index: 1, kind: input, shape index: {}]
  %s2 = inlined_call_operand.vmem [shape: f32[2,1,128], index: 2, kind: input, shape index: {}]
  %s3 = inlined_call_operand.vmem [shape: bf16[256,128], index: 3, kind: input, shape index: {}]
  %s4 = inlined_call_operand.vmem [shape: f32[1,128], index: 4, kind: input, shape index: {}]
  %s5 = inlined_call_operand.vmem [shape: f32[32,128], index: 5, kind: output, shape index: {}]
  %s6 = sld [smem:[#allocation0]]
  $region53: #{formhead_forward.1} parent=0
    _
  %s8 = ssub.s32 1, %s6
  %s9 = scalar_select 0, %s8, %s6
  loop: start=0, step=1, limit=4
  $region2: #{formhead_forward.1} parent=0 // loop_pre_header
    _
  $region3: #{formhead_forward.1} parent=0 // loop_header
    %s11 = sphi 0, %s15
    %p12 = scmp.ge.s32.totalorder %s11, 4
    %s21 = sphi 0, %s23
    %s24 = sphi 0, %s21
    %s25 = sphi 0, %s24
    %s41 = sphi 0, %s25
    %s45 = sphi 0, %s45
    %s47 = sphi 0, %s45
    %s48 = sphi 0, %s47
    %s62 = sphi 0, %s48
    %s66 = sphi 0, %s66
    %s68 = sphi 0, %s66
    %s69 = sphi 0, %s68
    %s83 = sphi 0, %s69
    %s87 = sphi 0, %s87
    %s89 = sphi 0, %s87
    %s90 = sphi 0, %s89
    %s104 = sphi 0, %s90
    %s108 = sphi 0, %s108
    %s110 = sphi 0, %s108
    %s111 = sphi 0, %s110
    %s125 = sphi 0, %s111
    %s131 = sphi 0, %s133
    %s134 = sphi 0, %s131
    %s135 = sphi 0, %s134
    %s151 = sphi 0, %s135
  $region4: #{formhead_forward.1} parent=0 // loop_header_branch
    %14 = sbr.rel (%p12) target = $region8
  $region5: #{formhead_forward.1} parent=0 // loop_body
    %s16 = ssub.s32 %s11, 1
    %s17 = ssub.s32 %s11, 2
    %s18 = sadd.s32 %s11, 1
    %s19 = ssub.s32 %s11, %s18
    %p20 = scmp.eq.s32.totalorder %s19, 0
    %s22 = sadd.s32 %s21, 1
    %s23 = scalar_select %p20, %s21, %s22
    %p26 = pneg %p20
    %p27 = scmp.eq.s32.totalorder %s11, 1
    %p28 = por %p26, %p27
    %p29 = scmp.ne.s32.totalorder %s21, %s24
    %p30 = scmp.eq.s32.totalorder %s11, 0
    %p31 = por %p29, %p30
    %p32 = scmp.ne.s32.totalorder %s21, %s24
    %p33 = scmp.eq.s32.totalorder %s16, 1
    %p34 = por %p32, %p33
    %p35 = scmp.ne.s32.totalorder %s24, %s25
    %p36 = scmp.eq.s32.totalorder %s16, 0
    %p37 = por %p35, %p36
    %p38 = scmp.ne.s32.totalorder %s24, %s25
    %p39 = scmp.eq.s32.totalorder %s17, 1
    %p40 = por %p38, %p39
    %p42 = scmp.ne.s32.totalorder %s25, %s41
    %p43 = scmp.eq.s32.totalorder %s17, 0
    %p44 = por %p42, %p43
    %s46 = sadd.s32 %s45, 1
    %p49 = scmp.eq.s32.totalorder %s11, 1
    %p50 = scmp.ne.s32.totalorder %s45, %s47
    %p51 = scmp.eq.s32.totalorder %s11, 0
    %p52 = por %p50, %p51
    %p53 = scmp.ne.s32.totalorder %s45, %s47
    %p54 = scmp.eq.s32.totalorder %s16, 1
    %p55 = por %p53, %p54
    %p56 = scmp.ne.s32.totalorder %s47, %s48
    %p57 = scmp.eq.s32.totalorder %s16, 0
    %p58 = por %p56, %p57
    %p59 = scmp.ne.s32.totalorder %s47, %s48
    %p60 = scmp.eq.s32.totalorder %s17, 1
    %p61 = por %p59, %p60
    %p63 = scmp.ne.s32.totalorder %s48, %s62
    %p64 = scmp.eq.s32.totalorder %s17, 0
    %p65 = por %p63, %p64
    %s67 = sadd.s32 %s66, 1
    %p70 = scmp.eq.s32.totalorder %s11, 1
    %p71 = scmp.ne.s32.totalorder %s66, %s68
    %p72 = scmp.eq.s32.totalorder %s11, 0
    %p73 = por %p71, %p72
    %p74 = scmp.ne.s32.totalorder %s66, %s68
    %p75 = scmp.eq.s32.totalorder %s16, 1
    %p76 = por %p74, %p75
    %p77 = scmp.ne.s32.totalorder %s68, %s69
    %p78 = scmp.eq.s32.totalorder %s16, 0
    %p79 = por %p77, %p78
    %p80 = scmp.ne.s32.totalorder %s68, %s69
    %p81 = scmp.eq.s32.totalorder %s17, 1
    %p82 = por %p80, %p81
    %p84 = scmp.ne.s32.totalorder %s69, %s83
    %p85 = scmp.eq.s32.totalorder %s17, 0
    %p86 = por %p84, %p85
    %s88 = sadd.s32 %s87, 1
    %p91 = scmp.eq.s32.totalorder %s11, 1
    %p92 = scmp.ne.s32.totalorder %s87, %s89
    %p93 = scmp.eq.s32.totalorder %s11, 0
    %p94 = por %p92, %p93
    %p95 = scmp.ne.s32.totalorder %s87, %s89
    %p96 = scmp.eq.s32.totalorder %s16, 1
    %p97 = por %p95, %p96
    %p98 = scmp.ne.s32.totalorder %s89, %s90
    %p99 = scmp.eq.s32.totalorder %s16, 0
    %p100 = por %p98, %p99
    %p101 = scmp.ne.s32.totalorder %s89, %s90
    %p102 = scmp.eq.s32.totalorder %s17, 1
    %p103 = por %p101, %p102
    %p105 = scmp.ne.s32.totalorder %s90, %s104
    %p106 = scmp.eq.s32.totalorder %s17, 0
    %p107 = por %p105, %p106
    %s109 = sadd.s32 %s108, 1
    %p112 = scmp.eq.s32.totalorder %s11, 1
    %p113 = scmp.ne.s32.totalorder %s108, %s110
    %p114 = scmp.eq.s32.totalorder %s11, 0
    %p115 = por %p113, %p114
    %p116 = scmp.ne.s32.totalorder %s108, %s110
    %p117 = scmp.eq.s32.totalorder %s16, 1
    %p118 = por %p116, %p117
    %p119 = scmp.ne.s32.totalorder %s110, %s111
    %p120 = scmp.eq.s32.totalorder %s16, 0
    %p121 = por %p119, %p120
    %p122 = scmp.ne.s32.totalorder %s110, %s111
    %p123 = scmp.eq.s32.totalorder %s17, 1
    %p124 = por %p122, %p123
    %p126 = scmp.ne.s32.totalorder %s111, %s125
    %p127 = scmp.eq.s32.totalorder %s17, 0
    %p128 = por %p126, %p127
    %s129 = ssub.s32 %s11, %s18
    %p130 = scmp.eq.s32.totalorder %s129, 0
    %s132 = sadd.s32 %s131, 1
    %s133 = scalar_select %p130, %s131, %s132
    %p136 = pneg %p130
    %p137 = scmp.eq.s32.totalorder %s11, 1
    %p138 = por %p136, %p137
    %p139 = scmp.ne.s32.totalorder %s131, %s134
    %p140 = scmp.eq.s32.totalorder %s11, 0
    %p141 = por %p139, %p140
    %p142 = scmp.ne.s32.totalorder %s131, %s134
    %p143 = scmp.eq.s32.totalorder %s16, 1
    %p144 = por %p142, %p143
    %p145 = scmp.ne.s32.totalorder %s134, %s135
    %p146 = scmp.eq.s32.totalorder %s16, 0
    %p147 = por %p145, %p146
    %p148 = scmp.ne.s32.totalorder %s134, %s135
    %p149 = scmp.eq.s32.totalorder %s17, 1
    %p150 = por %p148, %p149
    %p152 = scmp.ne.s32.totalorder %s135, %s151
    %p153 = scmp.eq.s32.totalorder %s17, 0
    %p154 = por %p152, %p153
    %p155 = scmp.le.s32.totalorder 1, %s11
    %p156 = scmp.lt.s32.totalorder %s11, 3
    %p157 = pnand %p155, %p156
    %p158 = pneg %p157
    // Predicated region
    $region9: #{formhead_forward.1} parent=5 // pred_check
      _
    $region10: #{formhead_forward.1} parent=5 // pred_check_branch
      %160 = sbr.rel (%p157) target = $region12
    $region11: #{formhead_forward.1} parent=5 // pred_region
      %s161 = ssub.s32 %s11, 1
      // Predicated region
      $region13: #{formhead_forward.1} parent=11 // pred_check
        %p162 = pneg %p58
      $region14: #{formhead_forward.1} parent=11 // pred_check_branch
        %164 = sbr.rel (%p162) target = $region16
      $region15: #{formhead_forward.1} parent=11 // pred_region
        _
      $region16: #{formhead_forward.1} parent=11 // pred_fallthru
        _
      // Predicated region
      $region17: #{formhead_forward.1} parent=11 // pred_check
        %p165 = pneg %p79
      $region18: #{formhead_forward.1} parent=11 // pred_check_branch
        %167 = sbr.rel (%p165) target = $region20
      $region19: #{formhead_forward.1} parent=11 // pred_region
        _
      $region20: #{formhead_forward.1} parent=11 // pred_fallthru
        _
      // Predicated region
      $region21: #{formhead_forward.1} parent=11 // pred_check
        %p168 = pneg %p100
      $region22: #{formhead_forward.1} parent=11 // pred_check_branch
        %170 = sbr.rel (%p168) target = $region24
      $region23: #{formhead_forward.1} parent=11 // pred_region
        _
      $region24: #{formhead_forward.1} parent=11 // pred_fallthru
        _
      // Predicated region
      $region25: #{formhead_forward.1} parent=11 // pred_check
        %p171 = pneg %p121
      $region26: #{formhead_forward.1} parent=11 // pred_check_branch
        %173 = sbr.rel (%p171) target = $region28
      $region27: #{formhead_forward.1} parent=11 // pred_region
        _
      $region28: #{formhead_forward.1} parent=11 // pred_fallthru
        _
    $region12: #{formhead_forward.1} parent=5 // pred_fallthru
      _
    %p174 = scmp.lt.s32.totalorder %s11, 2
    // Predicated region
    $region29: #{formhead_forward.1} parent=5 // pred_check
      %p175 = pneg %p174
    $region30: #{formhead_forward.1} parent=5 // pred_check_branch
      %177 = sbr.rel (%p175) target = $region32
    $region31: #{formhead_forward.1} parent=5 // pred_region
      // Predicated region
      $region33: #{formhead_forward.1} parent=31 // pred_check
        %p178 = pneg %p31
      $region34: #{formhead_forward.1} parent=31 // pred_check_branch
        %180 = sbr.rel (%p178) target = $region36
      $region35: #{formhead_forward.1} parent=31 // pred_region
        %p181 = scmp.lt.s32.totalorder %s11, 1
        %s182 = scalar_select %p181, %s11, 1
        %s183 = smul.addr %s182, 18
        %s184 = smul.addr %s183, 8
        %s185 = scalar_lea.vmem %s0, %s184
      $region36: #{formhead_forward.1} parent=31 // pred_fallthru
        _
    $region32: #{formhead_forward.1} parent=5 // pred_fallthru
      _
    %p186 = scmp.le.s32.totalorder 1, %s11
    %p187 = scmp.lt.s32.totalorder %s11, 3
    %p188 = pnand %p186, %p187
    %p189 = pneg %p188
    // Predicated region
    $region37: #{formhead_forward.1} parent=5 // pred_check
      _
    $region38: #{formhead_forward.1} parent=5 // pred_check_branch
      %191 = sbr.rel (%p188) target = $region40
    $region39: #{formhead_forward.1} parent=5 // pred_region
      %s192 = ssub.s32 %s11, 1
      %p193 = scmp.lt.s32.totalorder %s16, 1
      %s194 = scalar_select %p193, %s16, 1
      %s195 = smul.addr %s194, 18
      %s196 = smul.addr %s195, 8
      %s197 = scalar_lea.vmem %s0, %s196
      %p198 = pneg %p37
      %p199 = pneg %p34
      %p200 = pneg %p58
      %p201 = pneg %p55
      %p202 = pneg %p79
      %p203 = pneg %p76
      %p204 = pneg %p100
      %p205 = pneg %p97
      %p206 = pneg %p121
      %p207 = pneg %p118
      %p208 = pneg %p147
      %p209 = pneg %p144
      %s210 = smul.u32 2, %s16
      %p211 = scmp.lt.s32.totalorder %s210, 3
      %s212 = scalar_select %p211, %s210, 3
      %s213 = smul.addr %s212, 8
      %s214 = scalar_lea.vmem %s5, %s213
      %p215 = scmp.lt.s32.totalorder %s16, 1
      %s216 = scalar_select %p215, %s16, 1
      %s217 = smul.addr %s216, 18
      %s218 = smul.addr %s217, 8
      %s219 = scalar_lea.vmem %s0, %s218
      %s220 = smul.u32 2, %s16
      %p221 = scmp.lt.s32.totalorder %s220, 3
      %s222 = scalar_select %p221, %s220, 3
      %s223 = smul.addr %s222, 8
      %s224 = scalar_lea.vmem %s5, %s223
      %s225 = smul.u32 2, %s16
      %v227 = vld [vmem:[%s219] sm:$0xff]
      %v228 = vld [vmem:[%s219 + $0x8] sm:$0xff]
      %231 = vrot.lane.b32.xlu0 %v227, 16
      %v232 = vpop.permute.xlu0 %231
      %233 = vrot.lane.b32.xlu0 %v228, 16
      %v234 = vpop.permute.xlu0 %233
      %vm237 = vcmask 130048
      %v238 = vsel %vm237, %v227, %v232
      %v239 = vsel %vm237, %v228, %v234
      %242 = vrot.lane.b32.xlu0 %v238, 32
      %v243 = vpop.permute.xlu0 %242
      %244 = vrot.lane.b32.xlu0 %v239, 32
      %v245 = vpop.permute.xlu0 %244
      %vm248 = vcmask 261120
      %v249 = vsel %vm248, %v238, %v243
      %v250 = vsel %vm248, %v239, %v245
      %253 = vrot.lane.b32.xlu0 %v249, 64
      %v254 = vpop.permute.xlu0 %253
      %255 = vrot.lane.b32.xlu0 %v250, 64
      %v256 = vpop.permute.xlu0 %255
      %vm259 = vcmask 523264
      %v260 = vsel %vm259, %v249, %v254
      %v261 = vsel %vm259, %v250, %v256
      %s262 = scalar_lea.vmem %s219, 16
      %v263 = vld [vmem:[%s262] sm:$0xff]
      %v264 = vld [vmem:[%s262 + $0x8] sm:$0xff]
      %267 = vrot.lane.b32.xlu0 %v263, 16
      %v268 = vpop.permute.xlu0 %267
      %269 = vrot.lane.b32.xlu0 %v264, 16
      %v270 = vpop.permute.xlu0 %269
      %v273 = vsel %vm237, %v263, %v268
      %v274 = vsel %vm237, %v264, %v270
      %277 = vrot.lane.b32.xlu0 %v273, 32
      %v278 = vpop.permute.xlu0 %277
      %279 = vrot.lane.b32.xlu0 %v274, 32
      %v280 = vpop.permute.xlu0 %279
      %v283 = vsel %vm248, %v273, %v278
      %v284 = vsel %vm248, %v274, %v280
      %287 = vrot.lane.b32.xlu0 %v283, 64
      %v288 = vpop.permute.xlu0 %287
      %289 = vrot.lane.b32.xlu0 %v284, 64
      %v290 = vpop.permute.xlu0 %289
      %v293 = vsel %vm259, %v283, %v288
      %v294 = vsel %vm259, %v284, %v290
      %s295 = scalar_lea.vmem %s219, 32
      %v296 = vld [vmem:[%s295] sm:$0xff]
      %v297 = vld [vmem:[%s295 + $0x8] sm:$0xff]
      %300 = vrot.lane.b32.xlu0 %v296, 16
      %v301 = vpop.permute.xlu0 %300
      %302 = vrot.lane.b32.xlu0 %v297, 16
      %v303 = vpop.permute.xlu0 %302
      %v306 = vsel %vm237, %v296, %v301
      %v307 = vsel %vm237, %v297, %v303
      %310 = vrot.lane.b32.xlu0 %v306, 32
      %v311 = vpop.permute.xlu0 %310
      %312 = vrot.lane.b32.xlu0 %v307, 32
      %v313 = vpop.permute.xlu0 %312
      %v316 = vsel %vm248, %v306, %v311
      %v317 = vsel %vm248, %v307, %v313
      %320 = vrot.lane.b32.xlu0 %v316, 64
      %v321 = vpop.permute.xlu0 %320
      %322 = vrot.lane.b32.xlu0 %v317, 64
      %v323 = vpop.permute.xlu0 %322
      %v326 = vsel %vm259, %v316, %v321
      %v327 = vsel %vm259, %v317, %v323
      %s328 = scalar_lea.vmem %s219, 48
      %v329 = vld [vmem:[%s328] sm:$0xff]
      %v330 = vld [vmem:[%s328 + $0x8] sm:$0xff]
      %333 = vrot.lane.b32.xlu0 %v329, 16
      %v334 = vpop.permute.xlu0 %333
      %335 = vrot.lane.b32.xlu0 %v330, 16
      %v336 = vpop.permute.xlu0 %335
      %v339 = vsel %vm237, %v329, %v334
      %v340 = vsel %vm237, %v330, %v336
      %343 = vrot.lane.b32.xlu0 %v339, 32
      %v344 = vpop.permute.xlu0 %343
      %345 = vrot.lane.b32.xlu0 %v340, 32
      %v346 = vpop.permute.xlu0 %345
      %v349 = vsel %vm248, %v339, %v344
      %v350 = vsel %vm248, %v340, %v346
      %353 = vrot.lane.b32.xlu0 %v349, 64
      %v354 = vpop.permute.xlu0 %353
      %355 = vrot.lane.b32.xlu0 %v350, 64
      %v356 = vpop.permute.xlu0 %355
      %v359 = vsel %vm259, %v349, %v354
      %v360 = vsel %vm259, %v350, %v356
      %s361 = scalar_lea.vmem %s219, 64
      %v362 = vld [vmem:[%s361] sm:$0xff]
      %v363 = vld [vmem:[%s361 + $0x8] sm:$0xff]
      %366 = vrot.lane.b32.xlu0 %v362, 16
      %v367 = vpop.permute.xlu0 %366
      %368 = vrot.lane.b32.xlu0 %v363, 16
      %v369 = vpop.permute.xlu0 %368
      %v372 = vsel %vm237, %v362, %v367
      %v373 = vsel %vm237, %v363, %v369
      %376 = vrot.lane.b32.xlu0 %v372, 32
      %v377 = vpop.permute.xlu0 %376
      %378 = vrot.lane.b32.xlu0 %v373, 32
      %v379 = vpop.permute.xlu0 %378
      %v382 = vsel %vm248, %v372, %v377
      %v383 = vsel %vm248, %v373, %v379
      %386 = vrot.lane.b32.xlu0 %v382, 64
      %v387 = vpop.permute.xlu0 %386
      %388 = vrot.lane.b32.xlu0 %v383, 64
      %v389 = vpop.permute.xlu0 %388
      %v392 = vsel %vm259, %v382, %v387
      %v393 = vsel %vm259, %v383, %v389
      %s394 = scalar_lea.vmem %s219, 80
      %v395 = vld [vmem:[%s394] sm:$0xff]
      %v396 = vld [vmem:[%s394 + $0x8] sm:$0xff]
      %399 = vrot.lane.b32.xlu0 %v395, 16
      %v400 = vpop.permute.xlu0 %399
      %401 = vrot.lane.b32.xlu0 %v396, 16
      %v402 = vpop.permute.xlu0 %401
      %v405 = vsel %vm237, %v395, %v400
      %v406 = vsel %vm237, %v396, %v402
      %409 = vrot.lane.b32.xlu0 %v405, 32
      %v410 = vpop.permute.xlu0 %409
      %411 = vrot.lane.b32.xlu0 %v406, 32
      %v412 = vpop.permute.xlu0 %411
      %v415 = vsel %vm248, %v405, %v410
      %v416 = vsel %vm248, %v406, %v412
      %419 = vrot.lane.b32.xlu0 %v415, 64
      %v420 = vpop.permute.xlu0 %419
      %421 = vrot.lane.b32.xlu0 %v416, 64
      %v422 = vpop.permute.xlu0 %421
      %v425 = vsel %vm259, %v415, %v420
      %v426 = vsel %vm259, %v416, %v422
      %s427 = scalar_lea.vmem %s219, 96
      %v428 = vld [vmem:[%s427] sm:$0xff]
      %v429 = vld [vmem:[%s427 + $0x8] sm:$0xff]
      %432 = vrot.lane.b32.xlu0 %v428, 16
      %v433 = vpop.permute.xlu0 %432
      %434 = vrot.lane.b32.xlu0 %v429, 16
      %v435 = vpop.permute.xlu0 %434
      %v438 = vsel %vm237, %v428, %v433
      %v439 = vsel %vm237, %v429, %v435
      %442 = vrot.lane.b32.xlu0 %v438, 32
      %v443 = vpop.permute.xlu0 %442
      %444 = vrot.lane.b32.xlu0 %v439, 32
      %v445 = vpop.permute.xlu0 %444
      %v448 = vsel %vm248, %v438, %v443
      %v449 = vsel %vm248, %v439, %v445
      %452 = vrot.lane.b32.xlu0 %v448, 64
      %v453 = vpop.permute.xlu0 %452
      %454 = vrot.lane.b32.xlu0 %v449, 64
      %v455 = vpop.permute.xlu0 %454
      %v458 = vsel %vm259, %v448, %v453
      %v459 = vsel %vm259, %v449, %v455
      %s460 = scalar_lea.vmem %s219, 112
      %v461 = vld [vmem:[%s460] sm:$0xff]
      %v462 = vld [vmem:[%s460 + $0x8] sm:$0xff]
      %465 = vrot.lane.b32.xlu0 %v461, 16
      %v466 = vpop.permute.xlu0 %465
      %467 = vrot.lane.b32.xlu0 %v462, 16
      %v468 = vpop.permute.xlu0 %467
      %v471 = vsel %vm237, %v461, %v466
      %v472 = vsel %vm237, %v462, %v468
      %475 = vrot.lane.b32.xlu0 %v471, 32
      %v476 = vpop.permute.xlu0 %475
      %477 = vrot.lane.b32.xlu0 %v472, 32
      %v478 = vpop.permute.xlu0 %477
      %v481 = vsel %vm248, %v471, %v476
      %v482 = vsel %vm248, %v472, %v478
      %485 = vrot.lane.b32.xlu0 %v481, 64
      %v486 = vpop.permute.xlu0 %485
      %487 = vrot.lane.b32.xlu0 %v482, 64
      %v488 = vpop.permute.xlu0 %487
      %v491 = vsel %vm259, %v481, %v486
      %v492 = vsel %vm259, %v482, %v488
      %s493 = scalar_lea.vmem %s219, 128
      %v494 = vld [vmem:[%s493] sm:$0xff]
      %v495 = vld [vmem:[%s493 + $0x8] sm:$0xff]
      %498 = vrot.lane.b32.xlu0 %v494, 16
      %v499 = vpop.permute.xlu0 %498
      %500 = vrot.lane.b32.xlu0 %v495, 16
      %v501 = vpop.permute.xlu0 %500
      %v504 = vsel %vm237, %v494, %v499
      %v505 = vsel %vm237, %v495, %v501
      %508 = vrot.lane.b32.xlu0 %v504, 32
      %v509 = vpop.permute.xlu0 %508
      %510 = vrot.lane.b32.xlu0 %v505, 32
      %v511 = vpop.permute.xlu0 %510
      %v514 = vsel %vm248, %v504, %v509
      %v515 = vsel %vm248, %v505, %v511
      %518 = vrot.lane.b32.xlu0 %v514, 64
      %v519 = vpop.permute.xlu0 %518
      %520 = vrot.lane.b32.xlu0 %v515, 64
      %v521 = vpop.permute.xlu0 %520
      %v524 = vsel %vm259, %v514, %v519
      %v525 = vsel %vm259, %v515, %v521
      %v526 = vld [vmem:[%s1] sm:$0x1]
      %v528 = vlaneseq
      %v529 = vshrl.u32 %v528, 7
      %v530 = vsub.s32 0, %v529
      %v531 = vrot.slane %v526, %v530
      %v533 = vmul.f32 %v260, %v531
      %v534 = vmul.f32 %v261, %v531
      %s535 = scalar_lea.vmem %s1, 1
      %v536 = vld [vmem:[%s535] sm:$0x1]
      %v538 = vlaneseq
      %v539 = vshrl.u32 %v538, 7
      %v540 = vsub.s32 0, %v539
      %v541 = vrot.slane %v536, %v540
      %v543 = vmul.f32 %v293, %v541
      %v544 = vmul.f32 %v294, %v541
      %v545 = vadd.f32 %v533, %v543
      %v546 = vadd.f32 %v534, %v544
      %s547 = scalar_lea.vmem %s1, 2
      %v548 = vld [vmem:[%s547] sm:$0x1]
      %v550 = vlaneseq
      %v551 = vshrl.u32 %v550, 7
      %v552 = vsub.s32 0, %v551
      %v553 = vrot.slane %v548, %v552
      %v555 = vmul.f32 %v359, %v553
      %v556 = vmul.f32 %v360, %v553
      %v557 = vadd.f32 %v545, %v555
      %v558 = vadd.f32 %v546, %v556
      %s559 = scalar_lea.vmem %s1, 3
      %v560 = vld [vmem:[%s559] sm:$0x1]
      %v562 = vlaneseq
      %v563 = vshrl.u32 %v562, 7
      %v564 = vsub.s32 0, %v563
      %v565 = vrot.slane %v560, %v564
      %v567 = vmul.f32 %v392, %v565
      %v568 = vmul.f32 %v393, %v565
      %v569 = vadd.f32 %v557, %v567
      %v570 = vadd.f32 %v558, %v568
      %v571 = vld [vmem:[%s2] sm:$0x1]
      %v573 = vlaneseq
      %v574 = vshrl.u32 %v573, 7
      %v575 = vsub.s32 0, %v574
      %v576 = vrot.slane %v571, %v575
      %v578 = vadd.f32 %v569, %v576
      %v579 = vadd.f32 %v570, %v576
      %vm580 = vcmp.gt.f32.partialorder %v578, 0.0
      %vm581 = vcmp.gt.f32.partialorder %v579, 0.0
      %v582 = vmul.f32 %v578, 0.01
      %v583 = vmul.f32 %v579, 0.01
      %v584 = vsel %vm580, %v578, %v582
      %v585 = vsel %vm581, %v579, %v583
      %v586 = vmul.f32 %v293, %v531
      %v587 = vmul.f32 %v294, %v531
      %v588 = vmul.f32 %v326, %v541
      %v589 = vmul.f32 %v327, %v541
      %v590 = vadd.f32 %v586, %v588
      %v591 = vadd.f32 %v587, %v589
      %v592 = vmul.f32 %v392, %v553
      %v593 = vmul.f32 %v393, %v553
      %v594 = vadd.f32 %v590, %v592
      %v595 = vadd.f32 %v591, %v593
      %v596 = vmul.f32 %v425, %v565
      %v597 = vmul.f32 %v426, %v565
      %v598 = vadd.f32 %v594, %v596
      %v599 = vadd.f32 %v595, %v597
      %v600 = vadd.f32 %v598, %v576
      %v601 = vadd.f32 %v599, %v576
      %vm602 = vcmp.gt.f32.partialorder %v600, 0.0
      %vm603 = vcmp.gt.f32.partialorder %v601, 0.0
      %v604 = vmul.f32 %v600, 0.01
      %v605 = vmul.f32 %v601, 0.01
      %v606 = vsel %vm602, %v600, %v604
      %v607 = vsel %vm603, %v601, %v605
      %v608 = vmax.f32 %v584, %v606
      %v609 = vmax.f32 %v585, %v607
      %v610 = vmul.f32 %v359, %v531
      %v611 = vmul.f32 %v360, %v531
      %v612 = vmul.f32 %v392, %v541
      %v613 = vmul.f32 %v393, %v541
      %v614 = vadd.f32 %v610, %v612
      %v615 = vadd.f32 %v611, %v613
      %v616 = vmul.f32 %v458, %v553
      %v617 = vmul.f32 %v459, %v553
      %v618 = vadd.f32 %v614, %v616
      %v619 = vadd.f32 %v615, %v617
      %v620 = vmul.f32 %v491, %v565
      %v621 = vmul.f32 %v492, %v565
      %v622 = vadd.f32 %v618, %v620
      %v623 = vadd.f32 %v619, %v621
      %v624 = vadd.f32 %v622, %v576
      %v625 = vadd.f32 %v623, %v576
      %vm626 = vcmp.gt.f32.partialorder %v624, 0.0
      %vm627 = vcmp.gt.f32.partialorder %v625, 0.0
      %v628 = vmul.f32 %v624, 0.01
      %v629 = vmul.f32 %v625, 0.01
      %v630 = vsel %vm626, %v624, %v628
      %v631 = vsel %vm627, %v625, %v629
      %v632 = vmax.f32 %v608, %v630
      %v633 = vmax.f32 %v609, %v631
      %v634 = vmul.f32 %v392, %v531
      %v635 = vmul.f32 %v393, %v531
      %v636 = vmul.f32 %v425, %v541
      %v637 = vmul.f32 %v426, %v541
      %v638 = vadd.f32 %v634, %v636
      %v639 = vadd.f32 %v635, %v637
      %v640 = vmul.f32 %v491, %v553
      %v641 = vmul.f32 %v492, %v553
      %v642 = vadd.f32 %v638, %v640
      %v643 = vadd.f32 %v639, %v641
      %v644 = vmul.f32 %v524, %v565
      %v645 = vmul.f32 %v525, %v565
      %v646 = vadd.f32 %v642, %v644
      %v647 = vadd.f32 %v643, %v645
      %v648 = vadd.f32 %v646, %v576
      %v649 = vadd.f32 %v647, %v576
      %vm650 = vcmp.gt.f32.partialorder %v648, 0.0
      %vm651 = vcmp.gt.f32.partialorder %v649, 0.0
      %v652 = vmul.f32 %v648, 0.01
      %v653 = vmul.f32 %v649, 0.01
      %v654 = vsel %vm650, %v648, %v652
      %v655 = vsel %vm651, %v649, %v653
      %v656 = vmax.f32 %v632, %v654
      %v657 = vmax.f32 %v633, %v655
      %v658 = vpack.c.bf16 %v657, %v656
      %v660 = vunpack.c.l.b16 %v658
      %v661 = vunpack.c.h.b16 %v658
      %v662 = vpack.c.b16 %v660, %v660
      %v663 = vpack.c.b16 %v661, %v661
      %666 = vst [vmem:[#allocation2] sm:$0xf] %v662
      %667 = vst [vmem:[#allocation2 + $0x8] sm:$0xf] %v663
      %s668 = scalar_lea.vmem %s1, 4
      %v669 = vld [vmem:[%s668] sm:$0x1]
      %v671 = vlaneseq
      %v672 = vshrl.u32 %v671, 7
      %v673 = vsub.s32 0, %v672
      %v674 = vrot.slane %v669, %v673
      %v676 = vmul.f32 %v260, %v674
      %v677 = vmul.f32 %v261, %v674
      %s678 = scalar_lea.vmem %s1, 5
      %v679 = vld [vmem:[%s678] sm:$0x1]
      %v681 = vlaneseq
      %v682 = vshrl.u32 %v681, 7
      %v683 = vsub.s32 0, %v682
      %v684 = vrot.slane %v679, %v683
      %v686 = vmul.f32 %v293, %v684
      %v687 = vmul.f32 %v294, %v684
      %v688 = vadd.f32 %v676, %v686
      %v689 = vadd.f32 %v677, %v687
      %s690 = scalar_lea.vmem %s1, 6
      %v691 = vld [vmem:[%s690] sm:$0x1]
      %v693 = vlaneseq
      %v694 = vshrl.u32 %v693, 7
      %v695 = vsub.s32 0, %v694
      %v696 = vrot.slane %v691, %v695
      %v698 = vmul.f32 %v359, %v696
      %v699 = vmul.f32 %v360, %v696
      %v700 = vadd.f32 %v688, %v698
      %v701 = vadd.f32 %v689, %v699
      %s702 = scalar_lea.vmem %s1, 7
      %v703 = vld [vmem:[%s702] sm:$0x1]
      %v705 = vlaneseq
      %v706 = vshrl.u32 %v705, 7
      %v707 = vsub.s32 0, %v706
      %v708 = vrot.slane %v703, %v707
      %v710 = vmul.f32 %v392, %v708
      %v711 = vmul.f32 %v393, %v708
      %v712 = vadd.f32 %v700, %v710
      %v713 = vadd.f32 %v701, %v711
      %s714 = scalar_lea.vmem %s2, 1
      %v715 = vld [vmem:[%s714] sm:$0x1]
      %v717 = vlaneseq
      %v718 = vshrl.u32 %v717, 7
      %v719 = vsub.s32 0, %v718
      %v720 = vrot.slane %v715, %v719
      %v722 = vadd.f32 %v712, %v720
      %v723 = vadd.f32 %v713, %v720
      %vm724 = vcmp.gt.f32.partialorder %v722, 0.0
      %vm725 = vcmp.gt.f32.partialorder %v723, 0.0
      %v726 = vmul.f32 %v722, 0.01
      %v727 = vmul.f32 %v723, 0.01
      %v728 = vsel %vm724, %v722, %v726
      %v729 = vsel %vm725, %v723, %v727
      %v730 = vmul.f32 %v293, %v674
      %v731 = vmul.f32 %v294, %v674
      %v732 = vmul.f32 %v326, %v684
      %v733 = vmul.f32 %v327, %v684
      %v734 = vadd.f32 %v730, %v732
      %v735 = vadd.f32 %v731, %v733
      %v736 = vmul.f32 %v392, %v696
      %v737 = vmul.f32 %v393, %v696
      %v738 = vadd.f32 %v734, %v736
      %v739 = vadd.f32 %v735, %v737
      %v740 = vmul.f32 %v425, %v708
      %v741 = vmul.f32 %v426, %v708
      %v742 = vadd.f32 %v738, %v740
      %v743 = vadd.f32 %v739, %v741
      %v744 = vadd.f32 %v742, %v720
      %v745 = vadd.f32 %v743, %v720
      %vm746 = vcmp.gt.f32.partialorder %v744, 0.0
      %vm747 = vcmp.gt.f32.partialorder %v745, 0.0
      %v748 = vmul.f32 %v744, 0.01
      %v749 = vmul.f32 %v745, 0.01
      %v750 = vsel %vm746, %v744, %v748
      %v751 = vsel %vm747, %v745, %v749
      %v752 = vmax.f32 %v728, %v750
      %v753 = vmax.f32 %v729, %v751
      %v754 = vmul.f32 %v359, %v674
      %v755 = vmul.f32 %v360, %v674
      %v756 = vmul.f32 %v392, %v684
      %v757 = vmul.f32 %v393, %v684
      %v758 = vadd.f32 %v754, %v756
      %v759 = vadd.f32 %v755, %v757
      %v760 = vmul.f32 %v458, %v696
      %v761 = vmul.f32 %v459, %v696
      %v762 = vadd.f32 %v758, %v760
      %v763 = vadd.f32 %v759, %v761
      %v764 = vmul.f32 %v491, %v708
      %v765 = vmul.f32 %v492, %v708
      %v766 = vadd.f32 %v762, %v764
      %v767 = vadd.f32 %v763, %v765
      %v768 = vadd.f32 %v766, %v720
      %v769 = vadd.f32 %v767, %v720
      %vm770 = vcmp.gt.f32.partialorder %v768, 0.0
      %vm771 = vcmp.gt.f32.partialorder %v769, 0.0
      %v772 = vmul.f32 %v768, 0.01
      %v773 = vmul.f32 %v769, 0.01
      %v774 = vsel %vm770, %v768, %v772
      %v775 = vsel %vm771, %v769, %v773
      %v776 = vmax.f32 %v752, %v774
      %v777 = vmax.f32 %v753, %v775
      %v778 = vmul.f32 %v392, %v674
      %v779 = vmul.f32 %v393, %v674
      %v780 = vmul.f32 %v425, %v684
      %v781 = vmul.f32 %v426, %v684
      %v782 = vadd.f32 %v778, %v780
      %v783 = vadd.f32 %v779, %v781
      %v784 = vmul.f32 %v491, %v696
      %v785 = vmul.f32 %v492, %v696
      %v786 = vadd.f32 %v782, %v784
      %v787 = vadd.f32 %v783, %v785
      %v788 = vmul.f32 %v524, %v708
      %v789 = vmul.f32 %v525, %v708
      %v790 = vadd.f32 %v786, %v788
      %v791 = vadd.f32 %v787, %v789
      %v792 = vadd.f32 %v790, %v720
      %v793 = vadd.f32 %v791, %v720
      %vm794 = vcmp.gt.f32.partialorder %v792, 0.0
      %vm795 = vcmp.gt.f32.partialorder %v793, 0.0
      %v796 = vmul.f32 %v792, 0.01
      %v797 = vmul.f32 %v793, 0.01
      %v798 = vsel %vm794, %v792, %v796
      %v799 = vsel %vm795, %v793, %v797
      %v800 = vmax.f32 %v776, %v798
      %v801 = vmax.f32 %v777, %v799
      %v802 = vpack.c.bf16 %v801, %v800
      %v804 = vunpack.c.l.b16 %v802
      %v805 = vunpack.c.h.b16 %v802
      %v806 = vpack.c.b16 %v804, %v804
      %v807 = vpack.c.b16 %v805, %v805
      %810 = vst [vmem:[#allocation2 + $0x4] sm:$0xf] %v806
      %811 = vst [vmem:[#allocation2 + $0xc] sm:$0xf] %v807
      %v812 = vld [vmem:[#allocation2] sm:$0xff]
      %v813 = vld [vmem:[#allocation2 + $0x8] sm:$0xff]
      %v814 = vld [vmem:[%s3] sm:$0xf]
      %v815 = vld [vmem:[%s3 + $0x4] sm:$0xf]
      %v816 = vld [vmem:[%s3 + $0x8] sm:$0xf]
      %v817 = vld [vmem:[%s3 + $0xc] sm:$0xf]
      %v818 = vld [vmem:[%s3 + $0x10] sm:$0xf]
      %v819 = vld [vmem:[%s3 + $0x14] sm:$0xf]
      %v820 = vld [vmem:[%s3 + $0x18] sm:$0xf]
      %v821 = vld [vmem:[%s3 + $0x1c] sm:$0xf]
      %v822 = vld [vmem:[%s3 + $0x20] sm:$0xf]
      %v823 = vld [vmem:[%s3 + $0x24] sm:$0xf]
      %v824 = vld [vmem:[%s3 + $0x28] sm:$0xf]
      %v825 = vld [vmem:[%s3 + $0x2c] sm:$0xf]
      %v826 = vld [vmem:[%s3 + $0x30] sm:$0xf]
      %v827 = vld [vmem:[%s3 + $0x34] sm:$0xf]
      %v828 = vld [vmem:[%s3 + $0x38] sm:$0xf]
      %v829 = vld [vmem:[%s3 + $0x3c] sm:$0xf]
      %v830 = vld [vmem:[%s3 + $0x40] sm:$0xf]
      %v831 = vld [vmem:[%s3 + $0x44] sm:$0xf]
      %v832 = vld [vmem:[%s3 + $0x48] sm:$0xf]
      %v833 = vld [vmem:[%s3 + $0x4c] sm:$0xf]
      %v834 = vld [vmem:[%s3 + $0x50] sm:$0xf]
      %v835 = vld [vmem:[%s3 + $0x54] sm:$0xf]
      %v836 = vld [vmem:[%s3 + $0x58] sm:$0xf]
      %v837 = vld [vmem:[%s3 + $0x5c] sm:$0xf]
      %v838 = vld [vmem:[%s3 + $0x60] sm:$0xf]
      %v839 = vld [vmem:[%s3 + $0x64] sm:$0xf]
      %v840 = vld [vmem:[%s3 + $0x68] sm:$0xf]
      %v841 = vld [vmem:[%s3 + $0x6c] sm:$0xf]
      %v842 = vld [vmem:[%s3 + $0x70] sm:$0xf]
      %v843 = vld [vmem:[%s3 + $0x74] sm:$0xf]
      %v844 = vld [vmem:[%s3 + $0x78] sm:$0xf]
      %v845 = vld [vmem:[%s3 + $0x7c] sm:$0xf]
      %v846 = vld [vmem:[%s4] sm:$0x1]
      %v848 = vlaneseq
      %v849 = vshrl.u32 %v848, 7
      %v850 = vsub.s32 0, %v849
      %v851 = vrot.slane %v846, %v850
      %v855 = vunpack.c.l.b16 %v812
      %v856 = vunpack.c.h.b16 %v812
      %v857 = vunpack.c.l.b16 %v813
      %v858 = vunpack.c.h.b16 %v813
      %v859 = vpack.c.b16 %v857, %v855
      %v860 = vpack.c.b16 %v858, %v856
      %v895 = vunpack.c.l.b16 %v814
      %v896 = vunpack.c.l.b16 %v815
      %v897 = vunpack.c.l.b16 %v816
      %v898 = vunpack.c.l.b16 %v817
      %v899 = vunpack.c.l.b16 %v818
      %v900 = vunpack.c.l.b16 %v819
      %v901 = vunpack.c.l.b16 %v820
      %v902 = vunpack.c.l.b16 %v821
      %v903 = vunpack.c.l.b16 %v822
      %v904 = vunpack.c.l.b16 %v823
      %v905 = vunpack.c.l.b16 %v824
      %v906 = vunpack.c.l.b16 %v825
      %v907 = vunpack.c.l.b16 %v826
      %v908 = vunpack.c.l.b16 %v827
      %v909 = vunpack.c.l.b16 %v828
      %v910 = vunpack.c.l.b16 %v829
      %v911 = vunpack.c.l.b16 %v830
      %v912 = vunpack.c.l.b16 %v831
      %v913 = vunpack.c.l.b16 %v832
      %v914 = vunpack.c.l.b16 %v833
      %v915 = vunpack.c.l.b16 %v834
      %v916 = vunpack.c.l.b16 %v835
      %v917 = vunpack.c.l.b16 %v836
      %v918 = vunpack.c.l.b16 %v837
      %v919 = vunpack.c.l.b16 %v838
      %v920 = vunpack.c.l.b16 %v839
      %v921 = vunpack.c.l.b16 %v840
      %v922 = vunpack.c.l.b16 %v841
      %v923 = vunpack.c.l.b16 %v842
      %v924 = vunpack.c.l.b16 %v843
      %v925 = vunpack.c.l.b16 %v844
      %v926 = vunpack.c.l.b16 %v845
      %v927 = vpack.c.b16 %v896, %v895
      %v928 = vpack.c.b16 %v898, %v897
      %v929 = vpack.c.b16 %v900, %v899
      %v930 = vpack.c.b16 %v902, %v901
      %v931 = vpack.c.b16 %v904, %v903
      %v932 = vpack.c.b16 %v906, %v905
      %v933 = vpack.c.b16 %v908, %v907
      %v934 = vpack.c.b16 %v910, %v909
      %v935 = vpack.c.b16 %v912, %v911
      %v936 = vpack.c.b16 %v914, %v913
      %v937 = vpack.c.b16 %v916, %v915
      %v938 = vpack.c.b16 %v918, %v917
      %v939 = vpack.c.b16 %v920, %v919
      %v940 = vpack.c.b16 %v922, %v921
      %v941 = vpack.c.b16 %v924, %v923
      %v942 = vpack.c.b16 %v926, %v925
      %959 = vmatprep.subr.bf16.mxu0 0
      %960 = vmatpush1.bf16.msra.mxu0 %v934
      %961 = vmatprep.subr.bf16.mxu0 0
      %962 = vmatpush1.bf16.msra.mxu0 %v933
      %963 = vmatprep.subr.bf16.mxu0 0
      %964 = vmatpush1.bf16.msra.mxu0 %v932
      %965 = vmatprep.subr.bf16.mxu0 0
      %966 = vmatpush1.bf16.msra.mxu0 %v931
      %967 = vmatprep.subr.bf16.mxu0 0
      %968 = vmatpush1.bf16.msra.mxu0 %v930
      %969 = vmatprep.subr.bf16.mxu0 0
      %970 = vmatpush1.bf16.msra.mxu0 %v929
      %971 = vmatprep.subr.bf16.mxu0 0
      %972 = vmatpush1.bf16.msra.mxu0 %v928
      %973 = vmatprep.subr.bf16.mxu0 0
      %974 = vmatpush1.bf16.msra.mxu0 %v927
      %975 = vmatprep.subr.bf16.mxu0 0
      %976 = vmatpush2.bf16.msra.mxu0 %v942
      %977 = vmatprep.subr.bf16.mxu0 0
      %978 = vmatpush2.bf16.msra.mxu0 %v941
      %979 = vmatprep.subr.bf16.mxu0 0
      %980 = vmatpush2.bf16.msra.mxu0 %v940
      %981 = vmatprep.subr.bf16.mxu0 0
      %982 = vmatpush2.bf16.msra.mxu0 %v939
      %983 = vmatprep.subr.bf16.mxu0 0
      %984 = vmatpush2.bf16.msra.mxu0 %v938
      %985 = vmatprep.subr.bf16.mxu0 0
      %986 = vmatpush2.bf16.msra.mxu0 %v937
      %987 = vmatprep.subr.bf16.mxu0 0
      %988 = vmatpush2.bf16.msra.mxu0 %v936
      %989 = vmatprep.subr.bf16.mxu0 0
      %990 = vmatpush2.bf16.msra.mxu0 %v935
      %991 = vmatprep.mubr.bf16.mxu0 %v860
      %992 = vmatmul.mubr.bf16.gmra.mxu0 %v859
      %v993 = vpop.f32.mrf.mxu0
      %v994 = vadd.f32 %v851, %v993
      %v995 = vpop.f32.mrf.mxu0
      %v996 = vpop.f32.mrf.mxu0
      %v997 = vadd.f32 %v851, %v996
      %v998 = vpop.f32.mrf.mxu0
      %999 = vdwg.mxu0
      %vm1000 = vcmp.gt.f32.partialorder %v994, 0.0
      %vm1001 = vcmp.gt.f32.partialorder %v997, 0.0
      %v1002 = vmul.f32 %v994, 0.01
      %v1003 = vmul.f32 %v997, 0.01
      %v1004 = vsel %vm1000, %v994, %v1002
      %v1005 = vsel %vm1001, %v997, %v1003
      %1006 = vst [vmem:[%s224] sm:$0xff] %v1004
      %1007 = vst [vmem:[%s224 + $0x8] sm:$0xff] %v1005
      %s1008 = smul.u32 2, %s16
      %p1009 = scmp.lt.s32.totalorder %s1008, 3
      %s1010 = scalar_select %p1009, %s1008, 3
      %s1011 = smul.addr %s1010, 8
      %s1012 = scalar_lea.vmem %s5, %s1011
      // Predicated region
      $region41: #{formhead_forward.1} parent=39 // pred_check
        %p1013 = pneg %p144
      $region42: #{formhead_forward.1} parent=39 // pred_check_branch
        %1015 = sbr.rel (%p1013) target = $region44
      $region43: #{formhead_forward.1} parent=39 // pred_region
        %s1016 = smul.u32 2, %s16
      $region44: #{formhead_forward.1} parent=39 // pred_fallthru
        _
    $region40: #{formhead_forward.1} parent=5 // pred_fallthru
      _
    %p1017 = scmp.le.s32.totalorder 2, %s11
    // Predicated region
    $region45: #{formhead_forward.1} parent=5 // pred_check
      %p1018 = pneg %p1017
    $region46: #{formhead_forward.1} parent=5 // pred_check_branch
      %1020 = sbr.rel (%p1018) target = $region48
    $region47: #{formhead_forward.1} parent=5 // pred_region
      %s1021 = ssub.s32 %s11, 2
      // Predicated region
      $region49: #{formhead_forward.1} parent=47 // pred_check
        %p1022 = pneg %p150
      $region50: #{formhead_forward.1} parent=47 // pred_check_branch
        %1024 = sbr.rel (%p1022) target = $region52
      $region51: #{formhead_forward.1} parent=47 // pred_region
        %s1025 = smul.u32 2, %s17
        %p1026 = scmp.lt.s32.totalorder %s1025, 3
        %s1027 = scalar_select %p1026, %s1025, 3
        %s1028 = smul.addr %s1027, 8
        %s1029 = scalar_lea.vmem %s5, %s1028
      $region52: #{formhead_forward.1} parent=47 // pred_fallthru
        _
    $region48: #{formhead_forward.1} parent=5 // pred_fallthru
      _
  $region6: #{formhead_forward.1} parent=0 // loop_footer
    %s15 = sadd.s32 1, %s11
  $region7: #{formhead_forward.1} parent=0 // loop_footer_branch
    %10 = sbr.rel target = $region3
  $region8: #{formhead_forward.1} parent=0 // loop_exit
    _

</llo_original>
